<compile_context>
chip_gen: v5e
topology: v5e:2x2
jax: 0.10.0
libtpu: 0.0.40
codegen_flags: <defaults>
</compile_context>

<pallas_src>
import functools

import jax
import jax.numpy as jnp
from jax.experimental import pallas as pl
from jax.experimental.pallas import tpu as pltpu


def _dequant(a, matmul_dtype):
    # Integer (e.g. int8) adjacency goes through f32 (guaranteed lowering path);
    # float adjacency (bf16 / fp8 / f32) casts directly. Exact for 0/1 adjacency.
    if jnp.issubdtype(a.dtype, jnp.integer):
        a = a.astype(jnp.float32)
    return a.astype(matmul_dtype)


def _make_single_step_kernel(matmul_dtype):
    """Collapsed-k fast path: one (tm, N) x (N, F) dot per grid step."""

    def kernel(a_ref, h_ref, x_ref, o_ref):
        a = _dequant(a_ref[...], matmul_dtype)
        agg = jnp.dot(a, h_ref[...], preferred_element_type=jnp.float32)
        deg = jnp.sum(a, axis=1, dtype=jnp.float32, keepdims=True)
        deg = jnp.maximum(deg, 1.0)                     # np.clip(deg, 1, None)
        inv = pl.reciprocal(deg, approx=False)          # once per row tile -> exact is free
        o_ref[...] = (x_ref[...].astype(jnp.float32) + agg * inv).astype(o_ref.dtype)

    return kernel


def _make_streaming_kernel(matmul_dtype, resident_h, tk):
    """k-innermost reduction; f32 accumulation in VMEM scratch, epilogue at last k.

    Refs: a_ref (tm, tk) adjacency tile; h_ref (N, F) resident or (tk, F) streamed
    matmul features; x_ref (tm, F) residual features; o_ref (tm, F) output in the
    features dtype; acc_ref (tm, F) f32 scratch; deg_ref (tm, 1) f32 scratch.
    """

    def kernel(a_ref, h_ref, x_ref, o_ref, acc_ref, deg_ref):
        k = pl.program_id(1)

        @pl.when(k == 0)
        def _():
            acc_ref[...] = jnp.zeros_like(acc_ref)
            deg_ref[...] = jnp.zeros_like(deg_ref)

        a = _dequant(a_ref[...], matmul_dtype)
        if resident_h:
            start = pl.multiple_of(k * tk, tk)
            h = h_ref[pl.ds(start, tk), :]
        else:
            h = h_ref[...]

        acc_ref[...] += jnp.dot(a, h, preferred_element_type=jnp.float32)
        deg_ref[...] += jnp.sum(a, axis=1, dtype=jnp.float32, keepdims=True)

        @pl.when(k == pl.num_programs(1) - 1)
        def _():
            deg = jnp.maximum(deg_ref[...], 1.0)
            inv = pl.reciprocal(deg, approx=False)
            o_ref[...] = (x_ref[...].astype(jnp.float32)
                          + acc_ref[...] * inv).astype(o_ref.dtype)

    return kernel


def _vmem_capacity_bytes():
    try:
        cap = getattr(pltpu.get_tpu_info(), "vmem_capacity_bytes", None)
        if cap:
            return int(cap)
    except Exception:
        pass
    return 64 * 1024 * 1024          # conservative default = v7x per-core VMEM


def _pick_row_tile(n, target):
    tm = min(target, n)
    # Keep >= 2 row tiles so the "parallel" axis still shards across both v7x TCs.
    while n // tm < 2 and tm > 32:
        tm //= 2
    return tm


def _vmem_estimate_bytes(tm, tk, N, F, *, adj_item, mm_item, x_item, out_item,
                         single_step, resident_h):
    adj_b = 2 * tm * tk * adj_item                       # double-buffered adj tile
    if single_step or resident_h:
        h_b = 2 * N * F * mm_item                        # counted double-buffered (conservative)
    else:
        h_b = 2 * tk * F * mm_item
    x_b = 2 * tm * F * x_item
    o_b = 2 * tm * F * out_item
    scratch = 0 if single_step else (tm * F * 4 + tm * 4)
    temps = tm * tk * (max(mm_item, adj_item) + 4)       # in-kernel dequant + f32 reduce temps
    return adj_b + h_b + x_b + o_b + scratch + temps


@functools.partial(jax.jit, static_argnames=("tm", "tk", "single_step", "resident_h",
                                             "matmul_dtype", "vmem_limit"))
def _gnn_pallas(features, adj, *, tm, tk, single_step, resident_h, matmul_dtype,
                vmem_limit):
    N, F = features.shape
    h_mm = features.astype(matmul_dtype)     # N*F cast only; adj is never recast here

    out_shape = jax.ShapeDtypeStruct((N, F), features.dtype)

    if single_step:
        grid = (N // tm,)
        in_specs = [
            pl.BlockSpec((tm, N), lambda i: (i, 0)),     # adjacency row slab (narrow dtype)
            pl.BlockSpec((N, F), lambda i: (0, 0)),      # resident matmul features
            pl.BlockSpec((tm, F), lambda i: (i, 0)),     # residual features (native dtype)
        ]
        out_specs = pl.BlockSpec((tm, F), lambda i: (i, 0))
        scratch_shapes = []
        kernel = _make_single_step_kernel(matmul_dtype)
        semantics = ("parallel",)
    else:
        grid = (N // tm, N // tk)
        if resident_h:
            h_spec = pl.BlockSpec((N, F), lambda i, k: (0, 0))
        else:
            h_spec = pl.BlockSpec((tk, F), lambda i, k: (k, 0))
        in_specs = [
            pl.BlockSpec((tm, tk), lambda i, k: (i, k)),  # dominant adj stream
            h_spec,
            pl.BlockSpec((tm, F), lambda i, k: (i, 0)),
        ]
        out_specs = pl.BlockSpec((tm, F), lambda i, k: (i, 0))
        scratch_shapes = [pltpu.VMEM((tm, F), jnp.float32),
                          pltpu.VMEM((tm, 1), jnp.float32)]
        kernel = _make_streaming_kernel(matmul_dtype, resident_h, tk)
        semantics = ("parallel", "arbitrary")

    return pl.pallas_call(
        kernel,
        out_shape=out_shape,
        grid_spec=pltpu.PrefetchScalarGridSpec(
            num_scalar_prefetch=0,
            grid=grid,
            in_specs=in_specs,
            out_specs=out_specs,
            scratch_shapes=scratch_shapes,
        ),
        compiler_params=pltpu.CompilerParams(
            dimension_semantics=semantics,
            vmem_limit_bytes=vmem_limit,
        ),
    )(adj, h_mm, features)


def basic_gnn_layer(features, adj, *, tm=512, tk=512,
                    matmul_dtype=jnp.bfloat16,
                    resident_feature_bytes=8 * 1024 * 1024,
                    adj_slab_bytes=16 * 1024 * 1024):
    """Pallas implementation of BasicGNNLayer.forward.

    features : [N, F] float array.
    adj      : [N, N] dense adjacency. Store it in a narrow dtype at the caller
               (int8 on v5e/v6e, fp8/bf16 on v7x): the kernel streams it as-is from
               HBM and dequantizes per-tile in-kernel, so no N^2 recast pass is ever
               emitted by this wrapper. 0/1 adjacency is exact in int8/bf16/fp8;
               weighted adjacency should be stored >= bf16 (use matmul_dtype=f32
               for tight numerics).
    returns  : [N, F] in features.dtype.
    """
    N, F = features.shape
    assert adj.shape == (N, N), "adj must be a dense [N, N] matrix"

    adj_item = jnp.dtype(adj.dtype).itemsize
    mm_item = jnp.dtype(matmul_dtype).itemsize
    x_item = jnp.dtype(features.dtype).itemsize

    tm = _pick_row_tile(N, tm)
    assert N % tm == 0 and (tm % 8 == 0 or tm == N), f"N={N} not tileable with tm={tm}"
    # TODO(synk): pl.cdiv grid + masked edge tiles so tile sizes aren't dictated by N.

    features_resident = (N * F * mm_item) <= resident_feature_bytes
    single_step = features_resident and (2 * tm * N * adj_item) <= adj_slab_bytes

    if single_step:
        tk = N
        resident_h = True
    else:
        tk = min(tk, N)
        assert N % tk == 0 and (tk % 128 == 0 or tk == N), \
            f"N={N} not tileable with tk={tk}"
        resident_h = features_resident

    est = _vmem_estimate_bytes(tm, tk, N, F, adj_item=adj_item, mm_item=mm_item,
                               x_item=x_item, out_item=x_item,
                               single_step=single_step, resident_h=resident_h)
    cap = int(_vmem_capacity_bytes() * 0.8)   # ~51 MiB on v7x, ~102 MiB on v5e/v6e
    vmem_limit = min(cap, max(int(est * 1.3), 32 * 1024 * 1024))

    return _gnn_pallas(features, adj, tm=tm, tk=tk, single_step=single_step,
                       resident_h=resident_h, matmul_dtype=matmul_dtype,
                       vmem_limit=vmem_limit)


def _reference(features, adj_f32):
    deg = jnp.clip(jnp.sum(adj_f32, axis=1), 1.0, None)
    agg = (adj_f32 @ features) / deg[:, None]
    return features + agg


if __name__ == "__main__":
    key = jax.random.PRNGKey(0)
    k1, k2 = jax.random.split(key)

    N, F = 512, 128  # small graph: 512 nodes, 128 features
    features = jax.random.normal(k1, (N, F), dtype=jnp.float32)
    # 0/1 adjacency stored narrow at the caller (int8, 1 B/edge); the kernel streams
    # it as-is and dequantizes per-tile.
    adj_i8 = (jax.random.uniform(k2, (N, N)) < 0.05).astype(jnp.int8)
    # TODO(synk): block-sparse tile skipping via scalar-prefetched nonzero-tile tables
    # (the module's scipy-sparse adjacency) is not implemented; dense adj is used.

    ref = _reference(features, adj_i8.astype(jnp.float32))

    # 1) Default fast path: collapsed-k grid, resident bf16 features, int8 adjacency.
    out = jax.block_until_ready(basic_gnn_layer(features, adj_i8))
    assert out.shape == (N, F) and out.dtype == features.dtype
    err = float(jnp.max(jnp.abs(out - ref)))
    assert jnp.allclose(out, ref, atol=3e-2, rtol=3e-2), f"fast path mismatch: {err}"

    # 2) Streaming-k path (forced with small tiles + f32 matmul) for a tight numerics
    #    check of the accumulate kernel.
    out2 = jax.block_until_ready(
        basic_gnn_layer(features, adj_i8, tm=256, tk=128,
                        matmul_dtype=jnp.float32, resident_feature_bytes=0))
    err2 = float(jnp.max(jnp.abs(out2 - ref)))
    assert jnp.allclose(out2, ref, atol=1e-4, rtol=1e-4), f"streaming path mismatch: {err2}"

    print("KERNEL_OK")
</pallas_src>

<mosaic_0001>
module attributes {stable_mosaic.version = 11 : i64} {
  func.func @kernel(%arg0: i32, %arg1: memref<256x512xi8, #tpu.memory_space<vmem>>, %arg2: memref<512x128xbf16, #tpu.memory_space<vmem>>, %arg3: memref<256x128xf32, #tpu.memory_space<vmem>>, %arg4: memref<256x128xf32, #tpu.memory_space<vmem>>) attributes {dimension_semantics = [#tpu.dimension_semantics<parallel>], iteration_bounds = array<i64: 2>, scalar_prefetch = 0 : i64, scratch_operands = 0 : i64, tpu.core_type = #tpu.core_type<tc>, window_params = [{transform_indices = @transform_0, window_bounds = array<i64: 256, 512>}, {pipeline_mode = #tpu.pipeline_mode<synchronous>, transform_indices = @transform_1, window_bounds = array<i64: 512, 128>}, {transform_indices = @transform_2, window_bounds = array<i64: 256, 128>}, {transform_indices = @transform_3, window_bounds = array<i64: 256, 128>}]} {
    %c0 = arith.constant 0 : index
    %c0_0 = arith.constant 0 : index
    %0 = vector.load %arg1[%c0, %c0_0] : memref<256x512xi8, #tpu.memory_space<vmem>>, vector<256x512xi8>
    %1 = arith.sitofp %0 : vector<256x512xi8> to vector<256x512xf32>
    %2 = arith.truncf %1 : vector<256x512xf32> to vector<256x512xbf16>
    %c0_1 = arith.constant 0 : index
    %c0_2 = arith.constant 0 : index
    %3 = vector.load %arg2[%c0_1, %c0_2] : memref<512x128xbf16, #tpu.memory_space<vmem>>, vector<512x128xbf16>
    %cst = arith.constant dense<0.000000e+00> : vector<256x128xf32>
    %4 = tpu.matmul %2, %3, %cst {dimension_numbers = #tpu.dot_dimension_numbers<[1], [0], [0], [1], [0, 0, 1, 1], [], []>} : vector<256x512xbf16>, vector<512x128xbf16>, vector<256x128xf32> -> vector<256x128xf32>
    %5 = arith.extf %2 : vector<256x512xbf16> to vector<256x512xf32>
    %cst_3 = arith.constant dense<0.000000e+00> : vector<256xf32>
    %6 = vector.multi_reduction <add>, %5, %cst_3 [1] : vector<256x512xf32> to vector<256xf32>
    %7 = vector.shape_cast %6 : vector<256xf32> to vector<256x1xf32>
    %cst_4 = arith.constant 1.000000e+00 : f32
    %8 = vector.broadcast %cst_4 : f32 to vector<256x1xf32>
    %9 = arith.maximumf %7, %8 : vector<256x1xf32>
    %10 = tpu.reciprocal %9 : vector<256x1xf32> -> vector<256x1xf32>
    %c0_5 = arith.constant 0 : index
    %c0_6 = arith.constant 0 : index
    %11 = vector.load %arg3[%c0_5, %c0_6] : memref<256x128xf32, #tpu.memory_space<vmem>>, vector<256x128xf32>
    %12 = vector.broadcast %10 : vector<256x1xf32> to vector<256x128xf32>
    %13 = arith.mulf %4, %12 : vector<256x128xf32>
    %14 = arith.addf %11, %13 : vector<256x128xf32>
    %c0_7 = arith.constant 0 : index
    %c0_8 = arith.constant 0 : index
    %15 = vector.load %arg4[%c0_7, %c0_8] : memref<256x128xf32, #tpu.memory_space<vmem>>, vector<256x128xf32>
    tpu.vector_store %arg4[%c0_7, %c0_8], %14 {strides = array<i32>} : memref<256x128xf32, #tpu.memory_space<vmem>>, vector<256x128xf32>,
    return
  }
  func.func @transform_0(%arg0: i32) -> (i32, i32) {
    %c0_i32 = arith.constant 0 : i32
    %c0_i32_0 = arith.constant 0 : i32
    return %arg0, %c0_i32 : i32, i32
  }
  func.func @transform_1(%arg0: i32) -> (i32, i32) {
    %c0_i32 = arith.constant 0 : i32
    %c0_i32_0 = arith.constant 0 : i32
    %c0_i32_1 = arith.constant 0 : i32
    return %c0_i32, %c0_i32_0 : i32, i32
  }
  func.func @transform_2(%arg0: i32) -> (i32, i32) {
    %c0_i32 = arith.constant 0 : i32
    %c0_i32_0 = arith.constant 0 : i32
    return %arg0, %c0_i32 : i32, i32
  }
  func.func @transform_3(%arg0: i32) -> (i32, i32) {
    %c0_i32 = arith.constant 0 : i32
    %c0_i32_0 = arith.constant 0 : i32
    return %arg0, %c0_i32 : i32, i32
  }
}

</mosaic_0001>

<llo_original>
// kernel: _gnn_pallas.1
$region0: #{_gnn_pallas.1}
  #allocation0 [shape = 'u32[]', space=smem, size = 0x4, offset = 0x4, fixed_abs, tag = 'smem constant byte address 0x4 - core index']
  #allocation1 [shape = 'u32[72,128]{1,0:T(1,128)}', space=vmem, size = 0x9000, scoped, tag = 'internal scratch']
  %s0 = inlined_call_operand.hbm [shape: s8[512,512], index: 0, kind: input, shape index: {}]
  %s1 = inlined_call_operand.vmem [shape: bf16[512,128], index: 1, kind: input, shape index: {}]
  %s2 = inlined_call_operand.vmem [shape: f32[512,128], index: 2, kind: input, shape index: {}]
  %s3 = inlined_call_operand.hbm [shape: f32[512,128], index: 3, kind: output, shape index: {}]
  %s4 = sld [smem:[#allocation0]]
  $region49: #{_gnn_pallas.1} parent=0
    _
  %s6 = ssub.s32 1, %s4
  %s7 = scalar_select 0, %s6, %s4
  $region1: #{_gnn_pallas.1} parent=0
    #allocation2 [shape = 'u8[262144]{0}', space=vmem, size = 0x40000, scoped, tag = 'input window, operand 0']
    #allocation3 [shape = 's32[2]{0}', space=sflag, size = 0x8, scoped, tag = 'scoped memory for _gnn_pallas.1']
    #allocation4 [shape = 's32[2]{0}', space=sflag, size = 0x8, scoped, tag = 'scoped memory for _gnn_pallas.1']
    #allocation5 [shape = 'u8[262144]{0}', space=vmem, size = 0x40000, scoped, tag = 'output window, operand 0']
    %8 = vsyncpa [#allocation3], 0
    %s9 = scalar_lea.sflag [#allocation3], 1
    %10 = vsyncpa %s9, 0
    %11 = vsyncpa [#allocation4], 0
    %s12 = scalar_lea.sflag [#allocation4], 1
    %13 = vsyncpa %s12, 0
    loop: start=0, step=1, limit=4
    $region2: #{_gnn_pallas.1} parent=1 // loop_pre_header
      _
    $region3: #{_gnn_pallas.1} parent=1 // loop_header
      %s15 = sphi 0, %s19
      %p16 = scmp.ge.s32.totalorder %s15, 4
      %s25 = sphi 0, %s27
      %s28 = sphi 0, %s25
      %s29 = sphi 0, %s28
      %s45 = sphi 0, %s29
      %s49 = sphi 0, %s49
      %s51 = sphi 0, %s49
      %s52 = sphi 0, %s51
      %s66 = sphi 0, %s52
      %s72 = sphi 0, %s74
      %s75 = sphi 0, %s72
      %s76 = sphi 0, %s75
      %s92 = sphi 0, %s76
      %s98 = sphi 0, %s100
      %s101 = sphi 0, %s98
      %s102 = sphi 0, %s101
      %s118 = sphi 0, %s102
    $region4: #{_gnn_pallas.1} parent=1 // loop_header_branch
      %18 = sbr.rel (%p16) target = $region8
    $region5: #{_gnn_pallas.1} parent=1 // loop_body
      %s20 = ssub.s32 %s15, 1
      %s21 = ssub.s32 %s15, 2
      %s22 = sadd.s32 %s15, 1
      %s23 = ssub.s32 %s15, %s22
      %p24 = scmp.eq.s32.totalorder %s23, 0
      %s26 = sadd.s32 %s25, 1
      %s27 = scalar_select %p24, %s25, %s26
      %p30 = pneg %p24
      %p31 = scmp.eq.s32.totalorder %s15, 1
      %p32 = por %p30, %p31
      %p33 = scmp.ne.s32.totalorder %s25, %s28
      %p34 = scmp.eq.s32.totalorder %s15, 0
      %p35 = por %p33, %p34
      %p36 = scmp.ne.s32.totalorder %s25, %s28
      %p37 = scmp.eq.s32.totalorder %s20, 1
      %p38 = por %p36, %p37
      %p39 = scmp.ne.s32.totalorder %s28, %s29
      %p40 = scmp.eq.s32.totalorder %s20, 0
      %p41 = por %p39, %p40
      %p42 = scmp.ne.s32.totalorder %s28, %s29
      %p43 = scmp.eq.s32.totalorder %s21, 1
      %p44 = por %p42, %p43
      %p46 = scmp.ne.s32.totalorder %s29, %s45
      %p47 = scmp.eq.s32.totalorder %s21, 0
      %p48 = por %p46, %p47
      %s50 = sadd.s32 %s49, 1
      %p53 = scmp.eq.s32.totalorder %s15, 1
      %p54 = scmp.ne.s32.totalorder %s49, %s51
      %p55 = scmp.eq.s32.totalorder %s15, 0
      %p56 = por %p54, %p55
      %p57 = scmp.ne.s32.totalorder %s49, %s51
      %p58 = scmp.eq.s32.totalorder %s20, 1
      %p59 = por %p57, %p58
      %p60 = scmp.ne.s32.totalorder %s51, %s52
      %p61 = scmp.eq.s32.totalorder %s20, 0
      %p62 = por %p60, %p61
      %p63 = scmp.ne.s32.totalorder %s51, %s52
      %p64 = scmp.eq.s32.totalorder %s21, 1
      %p65 = por %p63, %p64
      %p67 = scmp.ne.s32.totalorder %s52, %s66
      %p68 = scmp.eq.s32.totalorder %s21, 0
      %p69 = por %p67, %p68
      %s70 = ssub.s32 %s15, %s22
      %p71 = scmp.eq.s32.totalorder %s70, 0
      %s73 = sadd.s32 %s72, 1
      %s74 = scalar_select %p71, %s72, %s73
      %p77 = pneg %p71
      %p78 = scmp.eq.s32.totalorder %s15, 1
      %p79 = por %p77, %p78
      %p80 = scmp.ne.s32.totalorder %s72, %s75
      %p81 = scmp.eq.s32.totalorder %s15, 0
      %p82 = por %p80, %p81
      %p83 = scmp.ne.s32.totalorder %s72, %s75
      %p84 = scmp.eq.s32.totalorder %s20, 1
      %p85 = por %p83, %p84
      %p86 = scmp.ne.s32.totalorder %s75, %s76
      %p87 = scmp.eq.s32.totalorder %s20, 0
      %p88 = por %p86, %p87
      %p89 = scmp.ne.s32.totalorder %s75, %s76
      %p90 = scmp.eq.s32.totalorder %s21, 1
      %p91 = por %p89, %p90
      %p93 = scmp.ne.s32.totalorder %s76, %s92
      %p94 = scmp.eq.s32.totalorder %s21, 0
      %p95 = por %p93, %p94
      %s96 = ssub.s32 %s15, %s22
      %p97 = scmp.eq.s32.totalorder %s96, 0
      %s99 = sadd.s32 %s98, 1
      %s100 = scalar_select %p97, %s98, %s99
      %p103 = pneg %p97
      %p104 = scmp.eq.s32.totalorder %s15, 1
      %p105 = por %p103, %p104
      %p106 = scmp.ne.s32.totalorder %s98, %s101
      %p107 = scmp.eq.s32.totalorder %s15, 0
      %p108 = por %p106, %p107
      %p109 = scmp.ne.s32.totalorder %s98, %s101
      %p110 = scmp.eq.s32.totalorder %s20, 1
      %p111 = por %p109, %p110
      %p112 = scmp.ne.s32.totalorder %s101, %s102
      %p113 = scmp.eq.s32.totalorder %s20, 0
      %p114 = por %p112, %p113
      %p115 = scmp.ne.s32.totalorder %s101, %s102
      %p116 = scmp.eq.s32.totalorder %s21, 1
      %p117 = por %p115, %p116
      %p119 = scmp.ne.s32.totalorder %s102, %s118
      %p120 = scmp.eq.s32.totalorder %s21, 0
      %p121 = por %p119, %p120
      %p122 = scmp.le.s32.totalorder 1, %s15
      %p123 = scmp.lt.s32.totalorder %s15, 3
      %p124 = pnand %p122, %p123
      %p125 = pneg %p124
      // Predicated region
      $region9: #{_gnn_pallas.1} parent=5 // pred_check
        _
      $region10: #{_gnn_pallas.1} parent=5 // pred_check_branch
        %127 = sbr.rel (%p124) target = $region12
      $region11: #{_gnn_pallas.1} parent=5 // pred_region
        %s128 = ssub.s32 %s15, 1
        // Predicated region
        $region13: #{_gnn_pallas.1} parent=11 // pred_check
          %p129 = pneg %p62
        $region14: #{_gnn_pallas.1} parent=11 // pred_check_branch
          %131 = sbr.rel (%p129) target = $region16
        $region15: #{_gnn_pallas.1} parent=11 // pred_region
          _
        $region16: #{_gnn_pallas.1} parent=11 // pred_fallthru
          _
      $region12: #{_gnn_pallas.1} parent=5 // pred_fallthru
        _
      %p132 = scmp.lt.s32.totalorder %s15, 2
      // Predicated region
      $region17: #{_gnn_pallas.1} parent=5 // pred_check
        %p133 = pneg %p132
      $region18: #{_gnn_pallas.1} parent=5 // pred_check_branch
        %135 = sbr.rel (%p133) target = $region20
      $region19: #{_gnn_pallas.1} parent=5 // pred_region
        // Predicated region
        $region21: #{_gnn_pallas.1} parent=19 // pred_check
          %p136 = pneg %p35
        $region22: #{_gnn_pallas.1} parent=19 // pred_check_branch
          %138 = sbr.rel (%p136) target = $region24
        $region23: #{_gnn_pallas.1} parent=19 // pred_region
          %s139 = sand.u32 %s25, 1
          %s140 = scalar_lea.sflag [#allocation3], %s139
          %s141 = sand.u32 %s25, 1
          %s142 = smul.addr %s141, 256
          %s143 = scalar_lea.vmem [#allocation2], %s142
          %s144 = smul.u32 8, %s15
          %146 = vsyncadd %s140, 0
          %s147 = smul.addr %s144, 4
          %s148 = smul.addr %s147, 8
          %s149 = scalar_lea.hbm %s0, %s148
          %s150 = sshll.u32 %s149, 4
          %s151 = int_to_ptr.hbm [resolvable:$true] %s150
          %s152 = sshll.u32 %s143, 4
          %s153 = int_to_ptr.vmem [resolvable:$true] %s152
          %158 = dma.hbm_to_vmem [thread:$0]  %s151, 4096, %s153, %s140, 512, 512, 32
        $region24: #{_gnn_pallas.1} parent=19 // pred_fallthru
          _
        // Predicated region
        $region25: #{_gnn_pallas.1} parent=19 // pred_check
          %p159 = pneg %p82
        $region26: #{_gnn_pallas.1} parent=19 // pred_check_branch
          %161 = sbr.rel (%p159) target = $region28
        $region27: #{_gnn_pallas.1} parent=19 // pred_region
          %s162 = smul.u32 32, %s15
          %p163 = scmp.lt.s32.totalorder %s162, 63
          %s164 = scalar_select %p163, %s162, 63
          %s165 = smul.addr %s164, 8
          %s166 = scalar_lea.vmem %s2, %s165
          %s167 = smul.u32 32, %s15
        $region28: #{_gnn_pallas.1} parent=19 // pred_fallthru
          _
      $region20: #{_gnn_pallas.1} parent=5 // pred_fallthru
        _
      %p168 = scmp.le.s32.totalorder 1, %s15
      %p169 = scmp.lt.s32.totalorder %s15, 3
      %p170 = pnand %p168, %p169
      %p171 = pneg %p170
      // Predicated region
      $region29: #{_gnn_pallas.1} parent=5 // pred_check
        _
      $region30: #{_gnn_pallas.1} parent=5 // pred_check_branch
        %173 = sbr.rel (%p170) target = $region32
      $region31: #{_gnn_pallas.1} parent=5 // pred_region
        %s174 = ssub.s32 %s15, 1
        %s175 = sand.u32 %s28, 1
        %s176 = scalar_lea.sflag [#allocation3], %s175
        %s177 = sand.u32 %s28, 1
        %s178 = smul.addr %s177, 256
        %s179 = scalar_lea.vmem [#allocation2], %s178
        // Predicated region
        $region33: #{_gnn_pallas.1} parent=31 // pred_check
          %p180 = pneg %p41
        $region34: #{_gnn_pallas.1} parent=31 // pred_check_branch
          %182 = sbr.rel (%p180) target = $region36
        $region35: #{_gnn_pallas.1} parent=31 // pred_region
          %184 = dma.done %s176, 4096
        $region36: #{_gnn_pallas.1} parent=31 // pred_fallthru
          _
        %s185 = sand.u32 %s28, 1
        %s186 = scalar_lea.sflag [#allocation3], %s185
        %s187 = sand.u32 %s28, 1
        %s188 = smul.addr %s187, 256
        %s189 = scalar_lea.vmem [#allocation2], %s188
        %p190 = pneg %p41
        %p191 = pneg %p38
        %p192 = pneg %p62
        %p193 = pneg %p59
        %s194 = smul.u32 32, %s20
        %p195 = scmp.lt.s32.totalorder %s194, 63
        %s196 = scalar_select %p195, %s194, 63
        %s197 = smul.addr %s196, 8
        %s198 = scalar_lea.vmem %s2, %s197
        %p199 = pneg %p88
        %p200 = pneg %p85
        %p201 = pneg %p114
        %p202 = pneg %p111
        %s203 = sand.u32 %s101, 1
        %s204 = scalar_lea.sflag [#allocation4], %s203
        %s205 = sand.u32 %s101, 1
        %s206 = smul.addr %s205, 256
        %s207 = scalar_lea.vmem [#allocation5], %s206
        %s208 = smul.u32 8, %s20
        %s209 = smul.u32 32, %s20
        %p210 = scmp.lt.s32.totalorder %s209, 63
        %s211 = scalar_select %p210, %s209, 63
        %s212 = smul.addr %s211, 8
        %s213 = scalar_lea.vmem %s2, %s212
        %s214 = smul.u32 32, %s20
        %s215 = smul.u32 32, %s20
        %v216 = vld [vmem:[%s179] sm:$0xff]
        %v217 = vld [vmem:[%s179 + $0x8] sm:$0xff]
        %v218 = vld [vmem:[%s179 + $0x10] sm:$0xff]
        %v219 = vld [vmem:[%s179 + $0x18] sm:$0xff]
        %v220 = vld [vmem:[%s179 + $0x20] sm:$0xff]
        %v221 = vld [vmem:[%s179 + $0x28] sm:$0xff]
        %v222 = vld [vmem:[%s179 + $0x30] sm:$0xff]
        %v223 = vld [vmem:[%s179 + $0x38] sm:$0xff]
        %v224 = vld [vmem:[%s179 + $0x40] sm:$0xff]
        %v225 = vld [vmem:[%s179 + $0x48] sm:$0xff]
        %v226 = vld [vmem:[%s179 + $0x50] sm:$0xff]
        %v227 = vld [vmem:[%s179 + $0x58] sm:$0xff]
        %v228 = vld [vmem:[%s179 + $0x60] sm:$0xff]
        %v229 = vld [vmem:[%s179 + $0x68] sm:$0xff]
        %v230 = vld [vmem:[%s179 + $0x70] sm:$0xff]
        %v231 = vld [vmem:[%s179 + $0x78] sm:$0xff]
        %v232 = vld [vmem:[%s179 + $0x80] sm:$0xff]
        %v233 = vld [vmem:[%s179 + $0x88] sm:$0xff]
        %v234 = vld [vmem:[%s179 + $0x90] sm:$0xff]
        %v235 = vld [vmem:[%s179 + $0x98] sm:$0xff]
        %v236 = vld [vmem:[%s179 + $0xa0] sm:$0xff]
        %v237 = vld [vmem:[%s179 + $0xa8] sm:$0xff]
        %v238 = vld [vmem:[%s179 + $0xb0] sm:$0xff]
        %v239 = vld [vmem:[%s179 + $0xb8] sm:$0xff]
        %v240 = vld [vmem:[%s179 + $0xc0] sm:$0xff]
        %v241 = vld [vmem:[%s179 + $0xc8] sm:$0xff]
        %v242 = vld [vmem:[%s179 + $0xd0] sm:$0xff]
        %v243 = vld [vmem:[%s179 + $0xd8] sm:$0xff]
        %v244 = vld [vmem:[%s179 + $0xe0] sm:$0xff]
        %v245 = vld [vmem:[%s179 + $0xe8] sm:$0xff]
        %v246 = vld [vmem:[%s179 + $0xf0] sm:$0xff]
        %v247 = vld [vmem:[%s179 + $0xf8] sm:$0xff]
        %v248 = vunpack.c.0.s8 %v216
        %v249 = vunpack.c.0.s8 %v217
        %v250 = vunpack.c.0.s8 %v218
        %v251 = vunpack.c.0.s8 %v219
        %v252 = vunpack.c.1.s8 %v216
        %v253 = vunpack.c.1.s8 %v217
        %v254 = vunpack.c.1.s8 %v218
        %v255 = vunpack.c.1.s8 %v219
        %v256 = vunpack.c.2.s8 %v216
        %v257 = vunpack.c.2.s8 %v217
        %v258 = vunpack.c.2.s8 %v218
        %v259 = vunpack.c.2.s8 %v219
        %v260 = vunpack.c.3.s8 %v216
        %v261 = vunpack.c.3.s8 %v217
        %v262 = vunpack.c.3.s8 %v218
        %v263 = vunpack.c.3.s8 %v219
        %v264 = vunpack.c.0.s8 %v220
        %v265 = vunpack.c.0.s8 %v221
        %v266 = vunpack.c.0.s8 %v222
        %v267 = vunpack.c.0.s8 %v223
        %v268 = vunpack.c.1.s8 %v220
        %v269 = vunpack.c.1.s8 %v221
        %v270 = vunpack.c.1.s8 %v222
        %v271 = vunpack.c.1.s8 %v223
        %v272 = vunpack.c.2.s8 %v220
        %v273 = vunpack.c.2.s8 %v221
        %v274 = vunpack.c.2.s8 %v222
        %v275 = vunpack.c.2.s8 %v223
        %v276 = vunpack.c.3.s8 %v220
        %v277 = vunpack.c.3.s8 %v221
        %v278 = vunpack.c.3.s8 %v222
        %v279 = vunpack.c.3.s8 %v223
        %v280 = vunpack.c.0.s8 %v224
        %v281 = vunpack.c.0.s8 %v225
        %v282 = vunpack.c.0.s8 %v226
        %v283 = vunpack.c.0.s8 %v227
        %v284 = vunpack.c.1.s8 %v224
        %v285 = vunpack.c.1.s8 %v225
        %v286 = vunpack.c.1.s8 %v226
        %v287 = vunpack.c.1.s8 %v227
        %v288 = vunpack.c.2.s8 %v224
        %v289 = vunpack.c.2.s8 %v225
        %v290 = vunpack.c.2.s8 %v226
        %v291 = vunpack.c.2.s8 %v227
        %v292 = vunpack.c.3.s8 %v224
        %v293 = vunpack.c.3.s8 %v225
        %v294 = vunpack.c.3.s8 %v226
        %v295 = vunpack.c.3.s8 %v227
        %v296 = vunpack.c.0.s8 %v228
        %v297 = vunpack.c.0.s8 %v229
        %v298 = vunpack.c.0.s8 %v230
        %v299 = vunpack.c.0.s8 %v231
        %v300 = vunpack.c.1.s8 %v228
        %v301 = vunpack.c.1.s8 %v229
        %v302 = vunpack.c.1.s8 %v230
        %v303 = vunpack.c.1.s8 %v231
        %v304 = vunpack.c.2.s8 %v228
        %v305 = vunpack.c.2.s8 %v229
        %v306 = vunpack.c.2.s8 %v230
        %v307 = vunpack.c.2.s8 %v231
        %v308 = vunpack.c.3.s8 %v228
        %v309 = vunpack.c.3.s8 %v229
        %v310 = vunpack.c.3.s8 %v230
        %v311 = vunpack.c.3.s8 %v231
        %v312 = vunpack.c.0.s8 %v232
        %v313 = vunpack.c.0.s8 %v233
        %v314 = vunpack.c.0.s8 %v234
        %v315 = vunpack.c.0.s8 %v235
        %v316 = vunpack.c.1.s8 %v232
        %v317 = vunpack.c.1.s8 %v233
        %v318 = vunpack.c.1.s8 %v234
        %v319 = vunpack.c.1.s8 %v235
        %v320 = vunpack.c.2.s8 %v232
        %v321 = vunpack.c.2.s8 %v233
        %v322 = vunpack.c.2.s8 %v234
        %v323 = vunpack.c.2.s8 %v235
        %v324 = vunpack.c.3.s8 %v232
        %v325 = vunpack.c.3.s8 %v233
        %v326 = vunpack.c.3.s8 %v234
        %v327 = vunpack.c.3.s8 %v235
        %v328 = vunpack.c.0.s8 %v236
        %v329 = vunpack.c.0.s8 %v237
        %v330 = vunpack.c.0.s8 %v238
        %v331 = vunpack.c.0.s8 %v239
        %v332 = vunpack.c.1.s8 %v236
        %v333 = vunpack.c.1.s8 %v237
        %v334 = vunpack.c.1.s8 %v238
        %v335 = vunpack.c.1.s8 %v239
        %v336 = vunpack.c.2.s8 %v236
        %v337 = vunpack.c.2.s8 %v237
        %v338 = vunpack.c.2.s8 %v238
        %v339 = vunpack.c.2.s8 %v239
        %v340 = vunpack.c.3.s8 %v236
        %v341 = vunpack.c.3.s8 %v237
        %v342 = vunpack.c.3.s8 %v238
        %v343 = vunpack.c.3.s8 %v239
        %v344 = vunpack.c.0.s8 %v240
        %v345 = vunpack.c.0.s8 %v241
        %v346 = vunpack.c.0.s8 %v242
        %v347 = vunpack.c.0.s8 %v243
        %v348 = vunpack.c.1.s8 %v240
        %v349 = vunpack.c.1.s8 %v241
        %v350 = vunpack.c.1.s8 %v242
        %v351 = vunpack.c.1.s8 %v243
        %v352 = vunpack.c.2.s8 %v240
        %v353 = vunpack.c.2.s8 %v241
        %v354 = vunpack.c.2.s8 %v242
        %v355 = vunpack.c.2.s8 %v243
        %v356 = vunpack.c.3.s8 %v240
        %v357 = vunpack.c.3.s8 %v241
        %v358 = vunpack.c.3.s8 %v242
        %v359 = vunpack.c.3.s8 %v243
        %v360 = vunpack.c.0.s8 %v244
        %v361 = vunpack.c.0.s8 %v245
        %v362 = vunpack.c.0.s8 %v246
        %v363 = vunpack.c.0.s8 %v247
        %v364 = vunpack.c.1.s8 %v244
        %v365 = vunpack.c.1.s8 %v245
        %v366 = vunpack.c.1.s8 %v246
        %v367 = vunpack.c.1.s8 %v247
        %v368 = vunpack.c.2.s8 %v244
        %v369 = vunpack.c.2.s8 %v245
        %v370 = vunpack.c.2.s8 %v246
        %v371 = vunpack.c.2.s8 %v247
        %v372 = vunpack.c.3.s8 %v244
        %v373 = vunpack.c.3.s8 %v245
        %v374 = vunpack.c.3.s8 %v246
        %v375 = vunpack.c.3.s8 %v247
        %v376 = vcvt.s32.f32 %v248
        %v377 = vcvt.s32.f32 %v249
        %v378 = vcvt.s32.f32 %v250
        %v379 = vcvt.s32.f32 %v251
        %v380 = vcvt.s32.f32 %v252
        %v381 = vcvt.s32.f32 %v253
        %v382 = vcvt.s32.f32 %v254
        %v383 = vcvt.s32.f32 %v255
        %v384 = vcvt.s32.f32 %v256
        %v385 = vcvt.s32.f32 %v257
        %v386 = vcvt.s32.f32 %v258
        %v387 = vcvt.s32.f32 %v259
        %v388 = vcvt.s32.f32 %v260
        %v389 = vcvt.s32.f32 %v261
        %v390 = vcvt.s32.f32 %v262
        %v391 = vcvt.s32.f32 %v263
        %v392 = vcvt.s32.f32 %v264
        %v393 = vcvt.s32.f32 %v265
        %v394 = vcvt.s32.f32 %v266
        %v395 = vcvt.s32.f32 %v267
        %v396 = vcvt.s32.f32 %v268
        %v397 = vcvt.s32.f32 %v269
        %v398 = vcvt.s32.f32 %v270
        %v399 = vcvt.s32.f32 %v271
        %v400 = vcvt.s32.f32 %v272
        %v401 = vcvt.s32.f32 %v273
        %v402 = vcvt.s32.f32 %v274
        %v403 = vcvt.s32.f32 %v275
        %v404 = vcvt.s32.f32 %v276
        %v405 = vcvt.s32.f32 %v277
        %v406 = vcvt.s32.f32 %v278
        %v407 = vcvt.s32.f32 %v279
        %v408 = vcvt.s32.f32 %v280
        %v409 = vcvt.s32.f32 %v281
        %v410 = vcvt.s32.f32 %v282
        %v411 = vcvt.s32.f32 %v283
        %v412 = vcvt.s32.f32 %v284
        %v413 = vcvt.s32.f32 %v285
        %v414 = vcvt.s32.f32 %v286
        %v415 = vcvt.s32.f32 %v287
        %v416 = vcvt.s32.f32 %v288
        %v417 = vcvt.s32.f32 %v289
        %v418 = vcvt.s32.f32 %v290
        %v419 = vcvt.s32.f32 %v291
        %v420 = vcvt.s32.f32 %v292
        %v421 = vcvt.s32.f32 %v293
        %v422 = vcvt.s32.f32 %v294
        %v423 = vcvt.s32.f32 %v295
        %v424 = vcvt.s32.f32 %v296
        %v425 = vcvt.s32.f32 %v297
        %v426 = vcvt.s32.f32 %v298
        %v427 = vcvt.s32.f32 %v299
        %v428 = vcvt.s32.f32 %v300
        %v429 = vcvt.s32.f32 %v301
        %v430 = vcvt.s32.f32 %v302
        %v431 = vcvt.s32.f32 %v303
        %v432 = vcvt.s32.f32 %v304
        %v433 = vcvt.s32.f32 %v305
        %v434 = vcvt.s32.f32 %v306
        %v435 = vcvt.s32.f32 %v307
        %v436 = vcvt.s32.f32 %v308
        %v437 = vcvt.s32.f32 %v309
        %v438 = vcvt.s32.f32 %v310
        %v439 = vcvt.s32.f32 %v311
        %v440 = vcvt.s32.f32 %v312
        %v441 = vcvt.s32.f32 %v313
        %v442 = vcvt.s32.f32 %v314
        %v443 = vcvt.s32.f32 %v315
        %v444 = vcvt.s32.f32 %v316
        %v445 = vcvt.s32.f32 %v317
        %v446 = vcvt.s32.f32 %v318
        %v447 = vcvt.s32.f32 %v319
        %v448 = vcvt.s32.f32 %v320
        %v449 = vcvt.s32.f32 %v321
        %v450 = vcvt.s32.f32 %v322
        %v451 = vcvt.s32.f32 %v323
        %v452 = vcvt.s32.f32 %v324
        %v453 = vcvt.s32.f32 %v325
        %v454 = vcvt.s32.f32 %v326
        %v455 = vcvt.s32.f32 %v327
        %v456 = vcvt.s32.f32 %v328
        %v457 = vcvt.s32.f32 %v329
        %v458 = vcvt.s32.f32 %v330
        %v459 = vcvt.s32.f32 %v331
        %v460 = vcvt.s32.f32 %v332
        %v461 = vcvt.s32.f32 %v333
        %v462 = vcvt.s32.f32 %v334
        %v463 = vcvt.s32.f32 %v335
        %v464 = vcvt.s32.f32 %v336
        %v465 = vcvt.s32.f32 %v337
        %v466 = vcvt.s32.f32 %v338
        %v467 = vcvt.s32.f32 %v339
        %v468 = vcvt.s32.f32 %v340
        %v469 = vcvt.s32.f32 %v341
        %v470 = vcvt.s32.f32 %v342
        %v471 = vcvt.s32.f32 %v343
        %v472 = vcvt.s32.f32 %v344
        %v473 = vcvt.s32.f32 %v345
        %v474 = vcvt.s32.f32 %v346
        %v475 = vcvt.s32.f32 %v347
        %v476 = vcvt.s32.f32 %v348
        %v477 = vcvt.s32.f32 %v349
        %v478 = vcvt.s32.f32 %v350
        %v479 = vcvt.s32.f32 %v351
        %v480 = vcvt.s32.f32 %v352
        %v481 = vcvt.s32.f32 %v353
        %v482 = vcvt.s32.f32 %v354
        %v483 = vcvt.s32.f32 %v355
        %v484 = vcvt.s32.f32 %v356
        %v485 = vcvt.s32.f32 %v357
        %v486 = vcvt.s32.f32 %v358
        %v487 = vcvt.s32.f32 %v359
        %v488 = vcvt.s32.f32 %v360
        %v489 = vcvt.s32.f32 %v361
        %v490 = vcvt.s32.f32 %v362
        %v491 = vcvt.s32.f32 %v363
        %v492 = vcvt.s32.f32 %v364
        %v493 = vcvt.s32.f32 %v365
        %v494 = vcvt.s32.f32 %v366
        %v495 = vcvt.s32.f32 %v367
        %v496 = vcvt.s32.f32 %v368
        %v497 = vcvt.s32.f32 %v369
        %v498 = vcvt.s32.f32 %v370
        %v499 = vcvt.s32.f32 %v371
        %v500 = vcvt.s32.f32 %v372
        %v501 = vcvt.s32.f32 %v373
        %v502 = vcvt.s32.f32 %v374
        %v503 = vcvt.s32.f32 %v375
        %v504 = vpack.c.bf16 %v380, %v376
        %v505 = vpack.c.bf16 %v381, %v377
        %v506 = vpack.c.bf16 %v382, %v378
        %v507 = vpack.c.bf16 %v383, %v379
        %v508 = vpack.c.bf16 %v388, %v384
        %v509 = vpack.c.bf16 %v389, %v385
        %v510 = vpack.c.bf16 %v390, %v386
        %v511 = vpack.c.bf16 %v391, %v387
        %v512 = vpack.c.bf16 %v396, %v392
        %v513 = vpack.c.bf16 %v397, %v393
        %v514 = vpack.c.bf16 %v398, %v394
        %v515 = vpack.c.bf16 %v399, %v395
        %v516 = vpack.c.bf16 %v404, %v400
        %v517 = vpack.c.bf16 %v405, %v401
        %v518 = vpack.c.bf16 %v406, %v402
        %v519 = vpack.c.bf16 %v407, %v403
        %v520 = vpack.c.bf16 %v412, %v408
        %v521 = vpack.c.bf16 %v413, %v409
        %v522 = vpack.c.bf16 %v414, %v410
        %v523 = vpack.c.bf16 %v415, %v411
        %v524 = vpack.c.bf16 %v420, %v416
        %v525 = vpack.c.bf16 %v421, %v417
        %v526 = vpack.c.bf16 %v422, %v418
        %v527 = vpack.c.bf16 %v423, %v419
        %v528 = vpack.c.bf16 %v428, %v424
        %v529 = vpack.c.bf16 %v429, %v425
        %v530 = vpack.c.bf16 %v430, %v426
        %v531 = vpack.c.bf16 %v431, %v427
        %v532 = vpack.c.bf16 %v436, %v432
        %v533 = vpack.c.bf16 %v437, %v433
        %v534 = vpack.c.bf16 %v438, %v434
        %v535 = vpack.c.bf16 %v439, %v435
        %v536 = vpack.c.bf16 %v444, %v440
        %v537 = vpack.c.bf16 %v445, %v441
        %v538 = vpack.c.bf16 %v446, %v442
        %v539 = vpack.c.bf16 %v447, %v443
        %v540 = vpack.c.bf16 %v452, %v448
        %v541 = vpack.c.bf16 %v453, %v449
        %v542 = vpack.c.bf16 %v454, %v450
        %v543 = vpack.c.bf16 %v455, %v451
        %v544 = vpack.c.bf16 %v460, %v456
        %v545 = vpack.c.bf16 %v461, %v457
        %v546 = vpack.c.bf16 %v462, %v458
        %v547 = vpack.c.bf16 %v463, %v459
        %v548 = vpack.c.bf16 %v468, %v464
        %v549 = vpack.c.bf16 %v469, %v465
        %v550 = vpack.c.bf16 %v470, %v466
        %v551 = vpack.c.bf16 %v471, %v467
        %v552 = vpack.c.bf16 %v476, %v472
        %v553 = vpack.c.bf16 %v477, %v473
        %v554 = vpack.c.bf16 %v478, %v474
        %v555 = vpack.c.bf16 %v479, %v475
        %v556 = vpack.c.bf16 %v484, %v480
        %v557 = vpack.c.bf16 %v485, %v481
        %v558 = vpack.c.bf16 %v486, %v482
        %v559 = vpack.c.bf16 %v487, %v483
        %v560 = vpack.c.bf16 %v492, %v488
        %v561 = vpack.c.bf16 %v493, %v489
        %v562 = vpack.c.bf16 %v494, %v490
        %v563 = vpack.c.bf16 %v495, %v491
        %v564 = vpack.c.bf16 %v500, %v496
        %v565 = vpack.c.bf16 %v501, %v497
        %v566 = vpack.c.bf16 %v502, %v498
        %v567 = vpack.c.bf16 %v503, %v499
        %v568 = vld [vmem:[%s1] sm:$0xf]
        %v569 = vld [vmem:[%s1 + $0x4] sm:$0xf]
        %v570 = vld [vmem:[%s1 + $0x8] sm:$0xf]
        %v571 = vld [vmem:[%s1 + $0xc] sm:$0xf]
        %v572 = vld [vmem:[%s1 + $0x10] sm:$0xf]
        %v573 = vld [vmem:[%s1 + $0x14] sm:$0xf]
        %v574 = vld [vmem:[%s1 + $0x18] sm:$0xf]
        %v575 = vld [vmem:[%s1 + $0x1c] sm:$0xf]
        %v576 = vld [vmem:[%s1 + $0x20] sm:$0xf]
        %v577 = vld [vmem:[%s1 + $0x24] sm:$0xf]
        %v578 = vld [vmem:[%s1 + $0x28] sm:$0xf]
        %v579 = vld [vmem:[%s1 + $0x2c] sm:$0xf]
        %v580 = vld [vmem:[%s1 + $0x30] sm:$0xf]
        %v581 = vld [vmem:[%s1 + $0x34] sm:$0xf]
        %v582 = vld [vmem:[%s1 + $0x38] sm:$0xf]
        %v583 = vld [vmem:[%s1 + $0x3c] sm:$0xf]
        %v584 = vld [vmem:[%s1 + $0x40] sm:$0xf]
        %v585 = vld [vmem:[%s1 + $0x44] sm:$0xf]
        %v586 = vld [vmem:[%s1 + $0x48] sm:$0xf]
        %v587 = vld [vmem:[%s1 + $0x4c] sm:$0xf]
        %v588 = vld [vmem:[%s1 + $0x50] sm:$0xf]
        %v589 = vld [vmem:[%s1 + $0x54] sm:$0xf]
        %v590 = vld [vmem:[%s1 + $0x58] sm:$0xf]
        %v591 = vld [vmem:[%s1 + $0x5c] sm:$0xf]
        %v592 = vld [vmem:[%s1 + $0x60] sm:$0xf]
        %v593 = vld [vmem:[%s1 + $0x64] sm:$0xf]
        %v594 = vld [vmem:[%s1 + $0x68] sm:$0xf]
        %v595 = vld [vmem:[%s1 + $0x6c] sm:$0xf]
        %v596 = vld [vmem:[%s1 + $0x70] sm:$0xf]
        %v597 = vld [vmem:[%s1 + $0x74] sm:$0xf]
        %v598 = vld [vmem:[%s1 + $0x78] sm:$0xf]
        %v599 = vld [vmem:[%s1 + $0x7c] sm:$0xf]
        %v600 = vld [vmem:[%s1 + $0x80] sm:$0xf]
        %v601 = vld [vmem:[%s1 + $0x84] sm:$0xf]
        %v602 = vld [vmem:[%s1 + $0x88] sm:$0xf]
        %v603 = vld [vmem:[%s1 + $0x8c] sm:$0xf]
        %v604 = vld [vmem:[%s1 + $0x90] sm:$0xf]
        %v605 = vld [vmem:[%s1 + $0x94] sm:$0xf]
        %v606 = vld [vmem:[%s1 + $0x98] sm:$0xf]
        %v607 = vld [vmem:[%s1 + $0x9c] sm:$0xf]
        %v608 = vld [vmem:[%s1 + $0xa0] sm:$0xf]
        %v609 = vld [vmem:[%s1 + $0xa4] sm:$0xf]
        %v610 = vld [vmem:[%s1 + $0xa8] sm:$0xf]
        %v611 = vld [vmem:[%s1 + $0xac] sm:$0xf]
        %v612 = vld [vmem:[%s1 + $0xb0] sm:$0xf]
        %v613 = vld [vmem:[%s1 + $0xb4] sm:$0xf]
        %v614 = vld [vmem:[%s1 + $0xb8] sm:$0xf]
        %v615 = vld [vmem:[%s1 + $0xbc] sm:$0xf]
        %v616 = vld [vmem:[%s1 + $0xc0] sm:$0xf]
        %v617 = vld [vmem:[%s1 + $0xc4] sm:$0xf]
        %v618 = vld [vmem:[%s1 + $0xc8] sm:$0xf]
        %v619 = vld [vmem:[%s1 + $0xcc] sm:$0xf]
        %v620 = vld [vmem:[%s1 + $0xd0] sm:$0xf]
        %v621 = vld [vmem:[%s1 + $0xd4] sm:$0xf]
        %v622 = vld [vmem:[%s1 + $0xd8] sm:$0xf]
        %v623 = vld [vmem:[%s1 + $0xdc] sm:$0xf]
        %v624 = vld [vmem:[%s1 + $0xe0] sm:$0xf]
        %v625 = vld [vmem:[%s1 + $0xe4] sm:$0xf]
        %v626 = vld [vmem:[%s1 + $0xe8] sm:$0xf]
        %v627 = vld [vmem:[%s1 + $0xec] sm:$0xf]
        %v628 = vld [vmem:[%s1 + $0xf0] sm:$0xf]
        %v629 = vld [vmem:[%s1 + $0xf4] sm:$0xf]
        %v630 = vld [vmem:[%s1 + $0xf8] sm:$0xf]
        %v631 = vld [vmem:[%s1 + $0xfc] sm:$0xf]
        %v696 = vunpack.c.l.b16 %v568
        %v697 = vunpack.c.l.b16 %v569
        %v698 = vunpack.c.l.b16 %v570
        %v699 = vunpack.c.l.b16 %v571
        %v700 = vunpack.c.l.b16 %v572
        %v701 = vunpack.c.l.b16 %v573
        %v702 = vunpack.c.l.b16 %v574
        %v703 = vunpack.c.l.b16 %v575
        %v704 = vunpack.c.l.b16 %v576
        %v705 = vunpack.c.l.b16 %v577
        %v706 = vunpack.c.l.b16 %v578
        %v707 = vunpack.c.l.b16 %v579
        %v708 = vunpack.c.l.b16 %v580
        %v709 = vunpack.c.l.b16 %v581
        %v710 = vunpack.c.l.b16 %v582
        %v711 = vunpack.c.l.b16 %v583
        %v712 = vunpack.c.l.b16 %v584
        %v713 = vunpack.c.l.b16 %v585
        %v714 = vunpack.c.l.b16 %v586
        %v715 = vunpack.c.l.b16 %v587
        %v716 = vunpack.c.l.b16 %v588
        %v717 = vunpack.c.l.b16 %v589
        %v718 = vunpack.c.l.b16 %v590
        %v719 = vunpack.c.l.b16 %v591
        %v720 = vunpack.c.l.b16 %v592
        %v721 = vunpack.c.l.b16 %v593
        %v722 = vunpack.c.l.b16 %v594
        %v723 = vunpack.c.l.b16 %v595
        %v724 = vunpack.c.l.b16 %v596
        %v725 = vunpack.c.l.b16 %v597
        %v726 = vunpack.c.l.b16 %v598
        %v727 = vunpack.c.l.b16 %v599
        %v728 = vunpack.c.l.b16 %v600
        %v729 = vunpack.c.l.b16 %v601
        %v730 = vunpack.c.l.b16 %v602
        %v731 = vunpack.c.l.b16 %v603
        %v732 = vunpack.c.l.b16 %v604
        %v733 = vunpack.c.l.b16 %v605
        %v734 = vunpack.c.l.b16 %v606
        %v735 = vunpack.c.l.b16 %v607
        %v736 = vunpack.c.l.b16 %v608
        %v737 = vunpack.c.l.b16 %v609
        %v738 = vunpack.c.l.b16 %v610
        %v739 = vunpack.c.l.b16 %v611
        %v740 = vunpack.c.l.b16 %v612
        %v741 = vunpack.c.l.b16 %v613
        %v742 = vunpack.c.l.b16 %v614
        %v743 = vunpack.c.l.b16 %v615
        %v744 = vunpack.c.l.b16 %v616
        %v745 = vunpack.c.l.b16 %v617
        %v746 = vunpack.c.l.b16 %v618
        %v747 = vunpack.c.l.b16 %v619
        %v748 = vunpack.c.l.b16 %v620
        %v749 = vunpack.c.l.b16 %v621
        %v750 = vunpack.c.l.b16 %v622
        %v751 = vunpack.c.l.b16 %v623
        %v752 = vunpack.c.l.b16 %v624
        %v753 = vunpack.c.l.b16 %v625
        %v754 = vunpack.c.l.b16 %v626
        %v755 = vunpack.c.l.b16 %v627
        %v756 = vunpack.c.l.b16 %v628
        %v757 = vunpack.c.l.b16 %v629
        %v758 = vunpack.c.l.b16 %v630
        %v759 = vunpack.c.l.b16 %v631
        %v760 = vpack.c.b16 %v697, %v696
        %v761 = vpack.c.b16 %v699, %v698
        %v762 = vpack.c.b16 %v701, %v700
        %v763 = vpack.c.b16 %v703, %v702
        %v764 = vpack.c.b16 %v705, %v704
        %v765 = vpack.c.b16 %v707, %v706
        %v766 = vpack.c.b16 %v709, %v708
        %v767 = vpack.c.b16 %v711, %v710
        %v768 = vpack.c.b16 %v713, %v712
        %v769 = vpack.c.b16 %v715, %v714
        %v770 = vpack.c.b16 %v717, %v716
        %v771 = vpack.c.b16 %v719, %v718
        %v772 = vpack.c.b16 %v721, %v720
        %v773 = vpack.c.b16 %v723, %v722
        %v774 = vpack.c.b16 %v725, %v724
        %v775 = vpack.c.b16 %v727, %v726
        %v776 = vpack.c.b16 %v729, %v728
        %v777 = vpack.c.b16 %v731, %v730
        %v778 = vpack.c.b16 %v733, %v732
        %v779 = vpack.c.b16 %v735, %v734
        %v780 = vpack.c.b16 %v737, %v736
        %v781 = vpack.c.b16 %v739, %v738
        %v782 = vpack.c.b16 %v741, %v740
        %v783 = vpack.c.b16 %v743, %v742
        %v784 = vpack.c.b16 %v745, %v744
        %v785 = vpack.c.b16 %v747, %v746
        %v786 = vpack.c.b16 %v749, %v748
        %v787 = vpack.c.b16 %v751, %v750
        %v788 = vpack.c.b16 %v753, %v752
        %v789 = vpack.c.b16 %v755, %v754
        %v790 = vpack.c.b16 %v757, %v756
        %v791 = vpack.c.b16 %v759, %v758
        %824 = vmatpush.bf16.msra.mxu0 %v767
        %825 = vmatpush.bf16.msra.mxu0 %v766
        %826 = vmatpush.bf16.msra.mxu0 %v765
        %827 = vmatpush.bf16.msra.mxu0 %v764
        %828 = vmatpush.bf16.msra.mxu0 %v763
        %829 = vmatpush.bf16.msra.mxu0 %v762
        %830 = vmatpush.bf16.msra.mxu0 %v761
        %831 = vmatpush.bf16.msra.mxu0 %v760
        %832 = vmatmul.bf16.gmra.mxu0 %v504
        %v833 = vpop.f32.mrf.mxu0
        %v834 = vadd.f32 0.0, %v833
        %v835 = vpop.f32.mrf.mxu0
        %v836 = vadd.f32 0.0, %v835
        %837 = vmatmul.bf16.gmra.mxu0 %v508
        %v838 = vpop.f32.mrf.mxu0
        %v839 = vadd.f32 0.0, %v838
        %v840 = vpop.f32.mrf.mxu0
        %v841 = vadd.f32 0.0, %v840
        %842 = vmatmul.bf16.gmra.mxu0 %v512
        %v843 = vpop.f32.mrf.mxu0
        %v844 = vadd.f32 0.0, %v843
        %v845 = vpop.f32.mrf.mxu0
        %v846 = vadd.f32 0.0, %v845
        %847 = vmatmul.bf16.gmra.mxu0 %v516
        %v848 = vpop.f32.mrf.mxu0
        %v849 = vadd.f32 0.0, %v848
        %v850 = vpop.f32.mrf.mxu0
        %v851 = vadd.f32 0.0, %v850
        %852 = vmatmul.bf16.gmra.mxu0 %v520
        %v853 = vpop.f32.mrf.mxu0
        %v854 = vadd.f32 0.0, %v853
        %v855 = vpop.f32.mrf.mxu0
        %v856 = vadd.f32 0.0, %v855
        %857 = vmatmul.bf16.gmra.mxu0 %v524
        %v858 = vpop.f32.mrf.mxu0
        %v859 = vadd.f32 0.0, %v858
        %v860 = vpop.f32.mrf.mxu0
        %v861 = vadd.f32 0.0, %v860
        %862 = vmatmul.bf16.gmra.mxu0 %v528
        %v863 = vpop.f32.mrf.mxu0
        %v864 = vadd.f32 0.0, %v863
        %v865 = vpop.f32.mrf.mxu0
        %v866 = vadd.f32 0.0, %v865
        %867 = vmatmul.bf16.gmra.mxu0 %v532
        %v868 = vpop.f32.mrf.mxu0
        %v869 = vadd.f32 0.0, %v868
        %v870 = vpop.f32.mrf.mxu0
        %v871 = vadd.f32 0.0, %v870
        %872 = vmatmul.bf16.gmra.mxu0 %v536
        %v873 = vpop.f32.mrf.mxu0
        %v874 = vadd.f32 0.0, %v873
        %v875 = vpop.f32.mrf.mxu0
        %v876 = vadd.f32 0.0, %v875
        %877 = vmatmul.bf16.gmra.mxu0 %v540
        %v878 = vpop.f32.mrf.mxu0
        %v879 = vadd.f32 0.0, %v878
        %v880 = vpop.f32.mrf.mxu0
        %v881 = vadd.f32 0.0, %v880
        %882 = vmatmul.bf16.gmra.mxu0 %v544
        %v883 = vpop.f32.mrf.mxu0
        %v884 = vadd.f32 0.0, %v883
        %v885 = vpop.f32.mrf.mxu0
        %v886 = vadd.f32 0.0, %v885
        %887 = vmatmul.bf16.gmra.mxu0 %v548
        %v888 = vpop.f32.mrf.mxu0
        %v889 = vadd.f32 0.0, %v888
        %v890 = vpop.f32.mrf.mxu0
        %v891 = vadd.f32 0.0, %v890
        %892 = vmatmul.bf16.gmra.mxu0 %v552
        %v893 = vpop.f32.mrf.mxu0
        %v894 = vadd.f32 0.0, %v893
        %v895 = vpop.f32.mrf.mxu0
        %v896 = vadd.f32 0.0, %v895
        %897 = vmatmul.bf16.gmra.mxu0 %v556
        %v898 = vpop.f32.mrf.mxu0
        %v899 = vadd.f32 0.0, %v898
        %v900 = vpop.f32.mrf.mxu0
        %v901 = vadd.f32 0.0, %v900
        %902 = vmatmul.bf16.gmra.mxu0 %v560
        %v903 = vpop.f32.mrf.mxu0
        %v904 = vadd.f32 0.0, %v903
        %v905 = vpop.f32.mrf.mxu0
        %v906 = vadd.f32 0.0, %v905
        %907 = vmatmul.bf16.gmra.mxu0 %v564
        %v908 = vpop.f32.mrf.mxu0
        %v909 = vadd.f32 0.0, %v908
        %v910 = vpop.f32.mrf.mxu0
        %v911 = vadd.f32 0.0, %v910
        %912 = vdwg.mxu0
        %913 = vmatpush.bf16.msra.mxu0 %v775
        %914 = vmatpush.bf16.msra.mxu0 %v774
        %915 = vmatpush.bf16.msra.mxu0 %v773
        %916 = vmatpush.bf16.msra.mxu0 %v772
        %917 = vmatpush.bf16.msra.mxu0 %v771
        %918 = vmatpush.bf16.msra.mxu0 %v770
        %919 = vmatpush.bf16.msra.mxu0 %v769
        %920 = vmatpush.bf16.msra.mxu0 %v768
        %921 = vmatmul.bf16.gmra.mxu0 %v505
        %v922 = vpop.f32.mrf.mxu0
        %v923 = vadd.f32 %v834, %v922
        %v924 = vpop.f32.mrf.mxu0
        %v925 = vadd.f32 %v836, %v924
        %926 = vmatmul.bf16.gmra.mxu0 %v509
        %v927 = vpop.f32.mrf.mxu0
        %v928 = vadd.f32 %v839, %v927
        %v929 = vpop.f32.mrf.mxu0
        %v930 = vadd.f32 %v841, %v929
        %931 = vmatmul.bf16.gmra.mxu0 %v513
        %v932 = vpop.f32.mrf.mxu0
        %v933 = vadd.f32 %v844, %v932
        %v934 = vpop.f32.mrf.mxu0
        %v935 = vadd.f32 %v846, %v934
        %936 = vmatmul.bf16.gmra.mxu0 %v517
        %v937 = vpop.f32.mrf.mxu0
        %v938 = vadd.f32 %v849, %v937
        %v939 = vpop.f32.mrf.mxu0
        %v940 = vadd.f32 %v851, %v939
        %941 = vmatmul.bf16.gmra.mxu0 %v521
        %v942 = vpop.f32.mrf.mxu0
        %v943 = vadd.f32 %v854, %v942
        %v944 = vpop.f32.mrf.mxu0
        %v945 = vadd.f32 %v856, %v944
        %946 = vmatmul.bf16.gmra.mxu0 %v525
        %v947 = vpop.f32.mrf.mxu0
        %v948 = vadd.f32 %v859, %v947
        %v949 = vpop.f32.mrf.mxu0
        %v950 = vadd.f32 %v861, %v949
        %951 = vmatmul.bf16.gmra.mxu0 %v529
        %v952 = vpop.f32.mrf.mxu0
        %v953 = vadd.f32 %v864, %v952
        %v954 = vpop.f32.mrf.mxu0
        %v955 = vadd.f32 %v866, %v954
        %956 = vmatmul.bf16.gmra.mxu0 %v533
        %v957 = vpop.f32.mrf.mxu0
        %v958 = vadd.f32 %v869, %v957
        %v959 = vpop.f32.mrf.mxu0
        %v960 = vadd.f32 %v871, %v959
        %961 = vmatmul.bf16.gmra.mxu0 %v537
        %v962 = vpop.f32.mrf.mxu0
        %v963 = vadd.f32 %v874, %v962
        %v964 = vpop.f32.mrf.mxu0
        %v965 = vadd.f32 %v876, %v964
        %966 = vmatmul.bf16.gmra.mxu0 %v541
        %v967 = vpop.f32.mrf.mxu0
        %v968 = vadd.f32 %v879, %v967
        %v969 = vpop.f32.mrf.mxu0
        %v970 = vadd.f32 %v881, %v969
        %971 = vmatmul.bf16.gmra.mxu0 %v545
        %v972 = vpop.f32.mrf.mxu0
        %v973 = vadd.f32 %v884, %v972
        %v974 = vpop.f32.mrf.mxu0
        %v975 = vadd.f32 %v886, %v974
        %976 = vmatmul.bf16.gmra.mxu0 %v549
        %v977 = vpop.f32.mrf.mxu0
        %v978 = vadd.f32 %v889, %v977
        %v979 = vpop.f32.mrf.mxu0
        %v980 = vadd.f32 %v891, %v979
        %981 = vmatmul.bf16.gmra.mxu0 %v553
        %v982 = vpop.f32.mrf.mxu0
        %v983 = vadd.f32 %v894, %v982
        %v984 = vpop.f32.mrf.mxu0
        %v985 = vadd.f32 %v896, %v984
        %986 = vmatmul.bf16.gmra.mxu0 %v557
        %v987 = vpop.f32.mrf.mxu0
        %v988 = vadd.f32 %v899, %v987
        %v989 = vpop.f32.mrf.mxu0
        %v990 = vadd.f32 %v901, %v989
        %991 = vmatmul.bf16.gmra.mxu0 %v561
        %v992 = vpop.f32.mrf.mxu0
        %v993 = vadd.f32 %v904, %v992
        %v994 = vpop.f32.mrf.mxu0
        %v995 = vadd.f32 %v906, %v994
        %996 = vmatmul.bf16.gmra.mxu0 %v565
        %v997 = vpop.f32.mrf.mxu0
        %v998 = vadd.f32 %v909, %v997
        %v999 = vpop.f32.mrf.mxu0
        %v1000 = vadd.f32 %v911, %v999
        %1001 = vdwg.mxu0
        %1002 = vmatpush.bf16.msra.mxu0 %v783
        %1003 = vmatpush.bf16.msra.mxu0 %v782
        %1004 = vmatpush.bf16.msra.mxu0 %v781
        %1005 = vmatpush.bf16.msra.mxu0 %v780
        %1006 = vmatpush.bf16.msra.mxu0 %v779
        %1007 = vmatpush.bf16.msra.mxu0 %v778
        %1008 = vmatpush.bf16.msra.mxu0 %v777
        %1009 = vmatpush.bf16.msra.mxu0 %v776
        %1010 = vmatmul.bf16.gmra.mxu0 %v506
        %v1011 = vpop.f32.mrf.mxu0
        %v1012 = vadd.f32 %v923, %v1011
        %v1013 = vpop.f32.mrf.mxu0
        %v1014 = vadd.f32 %v925, %v1013
        %1015 = vmatmul.bf16.gmra.mxu0 %v510
        %v1016 = vpop.f32.mrf.mxu0
        %v1017 = vadd.f32 %v928, %v1016
        %v1018 = vpop.f32.mrf.mxu0
        %v1019 = vadd.f32 %v930, %v1018
        %1020 = vmatmul.bf16.gmra.mxu0 %v514
        %v1021 = vpop.f32.mrf.mxu0
        %v1022 = vadd.f32 %v933, %v1021
        %v1023 = vpop.f32.mrf.mxu0
        %v1024 = vadd.f32 %v935, %v1023
        %1025 = vmatmul.bf16.gmra.mxu0 %v518
        %v1026 = vpop.f32.mrf.mxu0
        %v1027 = vadd.f32 %v938, %v1026
        %v1028 = vpop.f32.mrf.mxu0
        %v1029 = vadd.f32 %v940, %v1028
        %1030 = vmatmul.bf16.gmra.mxu0 %v522
        %v1031 = vpop.f32.mrf.mxu0
        %v1032 = vadd.f32 %v943, %v1031
        %v1033 = vpop.f32.mrf.mxu0
        %v1034 = vadd.f32 %v945, %v1033
        %1035 = vmatmul.bf16.gmra.mxu0 %v526
        %v1036 = vpop.f32.mrf.mxu0
        %v1037 = vadd.f32 %v948, %v1036
        %v1038 = vpop.f32.mrf.mxu0
        %v1039 = vadd.f32 %v950, %v1038
        %1040 = vmatmul.bf16.gmra.mxu0 %v530
        %v1041 = vpop.f32.mrf.mxu0
        %v1042 = vadd.f32 %v953, %v1041
        %v1043 = vpop.f32.mrf.mxu0
        %v1044 = vadd.f32 %v955, %v1043
        %1045 = vmatmul.bf16.gmra.mxu0 %v534
        %v1046 = vpop.f32.mrf.mxu0
        %v1047 = vadd.f32 %v958, %v1046
        %v1048 = vpop.f32.mrf.mxu0
        %v1049 = vadd.f32 %v960, %v1048
        %1050 = vmatmul.bf16.gmra.mxu0 %v538
        %v1051 = vpop.f32.mrf.mxu0
        %v1052 = vadd.f32 %v963, %v1051
        %v1053 = vpop.f32.mrf.mxu0
        %v1054 = vadd.f32 %v965, %v1053
        %1055 = vmatmul.bf16.gmra.mxu0 %v542
        %v1056 = vpop.f32.mrf.mxu0
        %v1057 = vadd.f32 %v968, %v1056
        %v1058 = vpop.f32.mrf.mxu0
        %v1059 = vadd.f32 %v970, %v1058
        %1060 = vmatmul.bf16.gmra.mxu0 %v546
        %v1061 = vpop.f32.mrf.mxu0
        %v1062 = vadd.f32 %v973, %v1061
        %v1063 = vpop.f32.mrf.mxu0
        %v1064 = vadd.f32 %v975, %v1063
        %1065 = vmatmul.bf16.gmra.mxu0 %v550
        %v1066 = vpop.f32.mrf.mxu0
        %v1067 = vadd.f32 %v978, %v1066
        %v1068 = vpop.f32.mrf.mxu0
        %v1069 = vadd.f32 %v980, %v1068
        %1070 = vmatmul.bf16.gmra.mxu0 %v554
        %v1071 = vpop.f32.mrf.mxu0
        %v1072 = vadd.f32 %v983, %v1071
        %v1073 = vpop.f32.mrf.mxu0
        %v1074 = vadd.f32 %v985, %v1073
        %1075 = vmatmul.bf16.gmra.mxu0 %v558
        %v1076 = vpop.f32.mrf.mxu0
        %v1077 = vadd.f32 %v988, %v1076
        %v1078 = vpop.f32.mrf.mxu0
        %v1079 = vadd.f32 %v990, %v1078
        %1080 = vmatmul.bf16.gmra.mxu0 %v562
        %v1081 = vpop.f32.mrf.mxu0
        %v1082 = vadd.f32 %v993, %v1081
        %v1083 = vpop.f32.mrf.mxu0
        %v1084 = vadd.f32 %v995, %v1083
        %1085 = vmatmul.bf16.gmra.mxu0 %v566
        %v1086 = vpop.f32.mrf.mxu0
        %v1087 = vadd.f32 %v998, %v1086
        %v1088 = vpop.f32.mrf.mxu0
        %v1089 = vadd.f32 %v1000, %v1088
        %1090 = vdwg.mxu0
        %1091 = vmatpush.bf16.msra.mxu0 %v791
        %1092 = vmatpush.bf16.msra.mxu0 %v790
        %1093 = vmatpush.bf16.msra.mxu0 %v789
        %1094 = vmatpush.bf16.msra.mxu0 %v788
        %1095 = vmatpush.bf16.msra.mxu0 %v787
        %1096 = vmatpush.bf16.msra.mxu0 %v786
        %1097 = vmatpush.bf16.msra.mxu0 %v785
        %1098 = vmatpush.bf16.msra.mxu0 %v784
        %1099 = vmatmul.bf16.gmra.mxu0 %v507
        %v1100 = vpop.f32.mrf.mxu0
        %v1101 = vadd.f32 %v1012, %v1100
        %v1102 = vpop.f32.mrf.mxu0
        %v1103 = vadd.f32 %v1014, %v1102
        %1104 = vmatmul.bf16.gmra.mxu0 %v511
        %v1105 = vpop.f32.mrf.mxu0
        %v1106 = vadd.f32 %v1017, %v1105
        %v1107 = vpop.f32.mrf.mxu0
        %v1108 = vadd.f32 %v1019, %v1107
        %1109 = vmatmul.bf16.gmra.mxu0 %v515
        %v1110 = vpop.f32.mrf.mxu0
        %v1111 = vadd.f32 %v1022, %v1110
        %v1112 = vpop.f32.mrf.mxu0
        %v1113 = vadd.f32 %v1024, %v1112
        %1114 = vmatmul.bf16.gmra.mxu0 %v519
        %v1115 = vpop.f32.mrf.mxu0
        %v1116 = vadd.f32 %v1027, %v1115
        %v1117 = vpop.f32.mrf.mxu0
        %v1118 = vadd.f32 %v1029, %v1117
        %1119 = vmatmul.bf16.gmra.mxu0 %v523
        %v1120 = vpop.f32.mrf.mxu0
        %v1121 = vadd.f32 %v1032, %v1120
        %v1122 = vpop.f32.mrf.mxu0
        %v1123 = vadd.f32 %v1034, %v1122
        %1124 = vmatmul.bf16.gmra.mxu0 %v527
        %v1125 = vpop.f32.mrf.mxu0
        %v1126 = vadd.f32 %v1037, %v1125
        %v1127 = vpop.f32.mrf.mxu0
        %v1128 = vadd.f32 %v1039, %v1127
        %1129 = vmatmul.bf16.gmra.mxu0 %v531
        %v1130 = vpop.f32.mrf.mxu0
        %v1131 = vadd.f32 %v1042, %v1130
        %v1132 = vpop.f32.mrf.mxu0
        %v1133 = vadd.f32 %v1044, %v1132
        %1134 = vmatmul.bf16.gmra.mxu0 %v535
        %v1135 = vpop.f32.mrf.mxu0
        %v1136 = vadd.f32 %v1047, %v1135
        %v1137 = vpop.f32.mrf.mxu0
        %v1138 = vadd.f32 %v1049, %v1137
        %1139 = vmatmul.bf16.gmra.mxu0 %v539
        %v1140 = vpop.f32.mrf.mxu0
        %v1141 = vadd.f32 %v1052, %v1140
        %v1142 = vpop.f32.mrf.mxu0
        %v1143 = vadd.f32 %v1054, %v1142
        %1144 = vmatmul.bf16.gmra.mxu0 %v543
        %v1145 = vpop.f32.mrf.mxu0
        %v1146 = vadd.f32 %v1057, %v1145
        %v1147 = vpop.f32.mrf.mxu0
        %v1148 = vadd.f32 %v1059, %v1147
        %1149 = vmatmul.bf16.gmra.mxu0 %v547
        %v1150 = vpop.f32.mrf.mxu0
        %v1151 = vadd.f32 %v1062, %v1150
        %v1152 = vpop.f32.mrf.mxu0
        %v1153 = vadd.f32 %v1064, %v1152
        %1154 = vmatmul.bf16.gmra.mxu0 %v551
        %v1155 = vpop.f32.mrf.mxu0
        %v1156 = vadd.f32 %v1067, %v1155
        %v1157 = vpop.f32.mrf.mxu0
        %v1158 = vadd.f32 %v1069, %v1157
        %1159 = vmatmul.bf16.gmra.mxu0 %v555
        %v1160 = vpop.f32.mrf.mxu0
        %v1161 = vadd.f32 %v1072, %v1160
        %v1162 = vpop.f32.mrf.mxu0
        %v1163 = vadd.f32 %v1074, %v1162
        %1164 = vmatmul.bf16.gmra.mxu0 %v559
        %v1165 = vpop.f32.mrf.mxu0
        %v1166 = vadd.f32 %v1077, %v1165
        %v1167 = vpop.f32.mrf.mxu0
        %v1168 = vadd.f32 %v1079, %v1167
        %1169 = vmatmul.bf16.gmra.mxu0 %v563
        %v1170 = vpop.f32.mrf.mxu0
        %v1171 = vadd.f32 %v1082, %v1170
        %v1172 = vpop.f32.mrf.mxu0
        %v1173 = vadd.f32 %v1084, %v1172
        %1174 = vmatmul.bf16.gmra.mxu0 %v567
        %v1175 = vpop.f32.mrf.mxu0
        %v1176 = vadd.f32 %v1087, %v1175
        %v1177 = vpop.f32.mrf.mxu0
        %v1178 = vadd.f32 %v1089, %v1177
        %1179 = vdwg.mxu0
        %v1180 = vunpack.c.l.bf16 %v504
        %v1181 = vunpack.c.l.bf16 %v505
        %v1182 = vunpack.c.l.bf16 %v506
        %v1183 = vunpack.c.l.bf16 %v507
        %v1184 = vunpack.c.h.bf16 %v504
        %v1185 = vunpack.c.h.bf16 %v505
        %v1186 = vunpack.c.h.bf16 %v506
        %v1187 = vunpack.c.h.bf16 %v507
        %v1188 = vunpack.c.l.bf16 %v508
        %v1189 = vunpack.c.l.bf16 %v509
        %v1190 = vunpack.c.l.bf16 %v510
        %v1191 = vunpack.c.l.bf16 %v511
        %v1192 = vunpack.c.h.bf16 %v508
        %v1193 = vunpack.c.h.bf16 %v509
        %v1194 = vunpack.c.h.bf16 %v510
        %v1195 = vunpack.c.h.bf16 %v511
        %v1196 = vunpack.c.l.bf16 %v512
        %v1197 = vunpack.c.l.bf16 %v513
        %v1198 = vunpack.c.l.bf16 %v514
        %v1199 = vunpack.c.l.bf16 %v515
        %v1200 = vunpack.c.h.bf16 %v512
        %v1201 = vunpack.c.h.bf16 %v513
        %v1202 = vunpack.c.h.bf16 %v514
        %v1203 = vunpack.c.h.bf16 %v515
        %v1204 = vunpack.c.l.bf16 %v516
        %v1205 = vunpack.c.l.bf16 %v517
        %v1206 = vunpack.c.l.bf16 %v518
        %v1207 = vunpack.c.l.bf16 %v519
        %v1208 = vunpack.c.h.bf16 %v516
        %v1209 = vunpack.c.h.bf16 %v517
        %v1210 = vunpack.c.h.bf16 %v518
        %v1211 = vunpack.c.h.bf16 %v519
        %v1212 = vunpack.c.l.bf16 %v520
        %v1213 = vunpack.c.l.bf16 %v521
        %v1214 = vunpack.c.l.bf16 %v522
        %v1215 = vunpack.c.l.bf16 %v523
        %v1216 = vunpack.c.h.bf16 %v520
        %v1217 = vunpack.c.h.bf16 %v521
        %v1218 = vunpack.c.h.bf16 %v522
        %v1219 = vunpack.c.h.bf16 %v523
        %v1220 = vunpack.c.l.bf16 %v524
        %v1221 = vunpack.c.l.bf16 %v525
        %v1222 = vunpack.c.l.bf16 %v526
        %v1223 = vunpack.c.l.bf16 %v527
        %v1224 = vunpack.c.h.bf16 %v524
        %v1225 = vunpack.c.h.bf16 %v525
        %v1226 = vunpack.c.h.bf16 %v526
        %v1227 = vunpack.c.h.bf16 %v527
        %v1228 = vunpack.c.l.bf16 %v528
        %v1229 = vunpack.c.l.bf16 %v529
        %v1230 = vunpack.c.l.bf16 %v530
        %v1231 = vunpack.c.l.bf16 %v531
        %v1232 = vunpack.c.h.bf16 %v528
        %v1233 = vunpack.c.h.bf16 %v529
        %v1234 = vunpack.c.h.bf16 %v530
        %v1235 = vunpack.c.h.bf16 %v531
        %v1236 = vunpack.c.l.bf16 %v532
        %v1237 = vunpack.c.l.bf16 %v533
        %v1238 = vunpack.c.l.bf16 %v534
        %v1239 = vunpack.c.l.bf16 %v535
        %v1240 = vunpack.c.h.bf16 %v532
        %v1241 = vunpack.c.h.bf16 %v533
        %v1242 = vunpack.c.h.bf16 %v534
        %v1243 = vunpack.c.h.bf16 %v535
        %v1244 = vunpack.c.l.bf16 %v536
        %v1245 = vunpack.c.l.bf16 %v537
        %v1246 = vunpack.c.l.bf16 %v538
        %v1247 = vunpack.c.l.bf16 %v539
        %v1248 = vunpack.c.h.bf16 %v536
        %v1249 = vunpack.c.h.bf16 %v537
        %v1250 = vunpack.c.h.bf16 %v538
        %v1251 = vunpack.c.h.bf16 %v539
        %v1252 = vunpack.c.l.bf16 %v540
        %v1253 = vunpack.c.l.bf16 %v541
        %v1254 = vunpack.c.l.bf16 %v542
        %v1255 = vunpack.c.l.bf16 %v543
        %v1256 = vunpack.c.h.bf16 %v540
        %v1257 = vunpack.c.h.bf16 %v541
        %v1258 = vunpack.c.h.bf16 %v542
        %v1259 = vunpack.c.h.bf16 %v543
        %v1260 = vunpack.c.l.bf16 %v544
        %v1261 = vunpack.c.l.bf16 %v545
        %v1262 = vunpack.c.l.bf16 %v546
        %v1263 = vunpack.c.l.bf16 %v547
        %v1264 = vunpack.c.h.bf16 %v544
        %v1265 = vunpack.c.h.bf16 %v545
        %v1266 = vunpack.c.h.bf16 %v546
        %v1267 = vunpack.c.h.bf16 %v547
        %v1268 = vunpack.c.l.bf16 %v548
        %v1269 = vunpack.c.l.bf16 %v549
        %v1270 = vunpack.c.l.bf16 %v550
        %v1271 = vunpack.c.l.bf16 %v551
        %v1272 = vunpack.c.h.bf16 %v548
        %v1273 = vunpack.c.h.bf16 %v549
        %v1274 = vunpack.c.h.bf16 %v550
        %v1275 = vunpack.c.h.bf16 %v551
        %v1276 = vunpack.c.l.bf16 %v552
        %v1277 = vunpack.c.l.bf16 %v553
        %v1278 = vunpack.c.l.bf16 %v554
        %v1279 = vunpack.c.l.bf16 %v555
        %v1280 = vunpack.c.h.bf16 %v552
        %v1281 = vunpack.c.h.bf16 %v553
        %v1282 = vunpack.c.h.bf16 %v554
        %v1283 = vunpack.c.h.bf16 %v555
        %v1284 = vunpack.c.l.bf16 %v556
        %v1285 = vunpack.c.l.bf16 %v557
        %v1286 = vunpack.c.l.bf16 %v558
        %v1287 = vunpack.c.l.bf16 %v559
        %v1288 = vunpack.c.h.bf16 %v556
        %v1289 = vunpack.c.h.bf16 %v557
        %v1290 = vunpack.c.h.bf16 %v558
        %v1291 = vunpack.c.h.bf16 %v559
        %v1292 = vunpack.c.l.bf16 %v560
        %v1293 = vunpack.c.l.bf16 %v561
        %v1294 = vunpack.c.l.bf16 %v562
        %v1295 = vunpack.c.l.bf16 %v563
        %v1296 = vunpack.c.h.bf16 %v560
        %v1297 = vunpack.c.h.bf16 %v561
        %v1298 = vunpack.c.h.bf16 %v562
        %v1299 = vunpack.c.h.bf16 %v563
        %v1300 = vunpack.c.l.bf16 %v564
        %v1301 = vunpack.c.l.bf16 %v565
        %v1302 = vunpack.c.l.bf16 %v566
        %v1303 = vunpack.c.l.bf16 %v567
        %v1304 = vunpack.c.h.bf16 %v564
        %v1305 = vunpack.c.h.bf16 %v565
        %v1306 = vunpack.c.h.bf16 %v566
        %v1307 = vunpack.c.h.bf16 %v567
        %v1308 = vadd.f32 %v1180, %v1181
        %v1309 = vadd.f32 %v1308, %v1182
        %v1310 = vadd.f32 %v1309, %v1183
        %1311 = vadd.xlane.f32.xlu0 %v1310
        %v1312 = vpop.xlane.xlu0 %1311
        %v1313 = vadd.f32 %v1184, %v1185
        %v1314 = vadd.f32 %v1313, %v1186
        %v1315 = vadd.f32 %v1314, %v1187
        %1316 = vadd.xlane.f32.xlu0 %v1315
        %v1317 = vpop.xlane.xlu0 %1316
        %v1318 = vadd.f32 %v1188, %v1189
        %v1319 = vadd.f32 %v1318, %v1190
        %v1320 = vadd.f32 %v1319, %v1191
        %1321 = vadd.xlane.f32.xlu0 %v1320
        %v1322 = vpop.xlane.xlu0 %1321
        %v1323 = vadd.f32 %v1192, %v1193
        %v1324 = vadd.f32 %v1323, %v1194
        %v1325 = vadd.f32 %v1324, %v1195
        %1326 = vadd.xlane.f32.xlu0 %v1325
        %v1327 = vpop.xlane.xlu0 %1326
        %v1328 = vadd.f32 %v1196, %v1197
        %v1329 = vadd.f32 %v1328, %v1198
        %v1330 = vadd.f32 %v1329, %v1199
        %1331 = vadd.xlane.f32.xlu0 %v1330
        %v1332 = vpop.xlane.xlu0 %1331
        %v1333 = vadd.f32 %v1200, %v1201
        %v1334 = vadd.f32 %v1333, %v1202
        %v1335 = vadd.f32 %v1334, %v1203
        %1336 = vadd.xlane.f32.xlu0 %v1335
        %v1337 = vpop.xlane.xlu0 %1336
        %v1338 = vadd.f32 %v1204, %v1205
        %v1339 = vadd.f32 %v1338, %v1206
        %v1340 = vadd.f32 %v1339, %v1207
        %1341 = vadd.xlane.f32.xlu0 %v1340
        %v1342 = vpop.xlane.xlu0 %1341
        %v1343 = vadd.f32 %v1208, %v1209
        %v1344 = vadd.f32 %v1343, %v1210
        %v1345 = vadd.f32 %v1344, %v1211
        %1346 = vadd.xlane.f32.xlu0 %v1345
        %v1347 = vpop.xlane.xlu0 %1346
        %v1348 = vadd.f32 %v1212, %v1213
        %v1349 = vadd.f32 %v1348, %v1214
        %v1350 = vadd.f32 %v1349, %v1215
        %1351 = vadd.xlane.f32.xlu0 %v1350
        %v1352 = vpop.xlane.xlu0 %1351
        %v1353 = vadd.f32 %v1216, %v1217
        %v1354 = vadd.f32 %v1353, %v1218
        %v1355 = vadd.f32 %v1354, %v1219
        %1356 = vadd.xlane.f32.xlu0 %v1355
        %v1357 = vpop.xlane.xlu0 %1356
        %v1358 = vadd.f32 %v1220, %v1221
        %v1359 = vadd.f32 %v1358, %v1222
        %v1360 = vadd.f32 %v1359, %v1223
        %1361 = vadd.xlane.f32.xlu0 %v1360
        %v1362 = vpop.xlane.xlu0 %1361
        %v1363 = vadd.f32 %v1224, %v1225
        %v1364 = vadd.f32 %v1363, %v1226
        %v1365 = vadd.f32 %v1364, %v1227
        %1366 = vadd.xlane.f32.xlu0 %v1365
        %v1367 = vpop.xlane.xlu0 %1366
        %v1368 = vadd.f32 %v1228, %v1229
        %v1369 = vadd.f32 %v1368, %v1230
        %v1370 = vadd.f32 %v1369, %v1231
        %1371 = vadd.xlane.f32.xlu0 %v1370
        %v1372 = vpop.xlane.xlu0 %1371
        %v1373 = vadd.f32 %v1232, %v1233
        %v1374 = vadd.f32 %v1373, %v1234
        %v1375 = vadd.f32 %v1374, %v1235
        %1376 = vadd.xlane.f32.xlu0 %v1375
        %v1377 = vpop.xlane.xlu0 %1376
        %v1378 = vadd.f32 %v1236, %v1237
        %v1379 = vadd.f32 %v1378, %v1238
        %v1380 = vadd.f32 %v1379, %v1239
        %1381 = vadd.xlane.f32.xlu0 %v1380
        %v1382 = vpop.xlane.xlu0 %1381
        %v1383 = vadd.f32 %v1240, %v1241
        %v1384 = vadd.f32 %v1383, %v1242
        %v1385 = vadd.f32 %v1384, %v1243
        %1386 = vadd.xlane.f32.xlu0 %v1385
        %v1387 = vpop.xlane.xlu0 %1386
        %v1388 = vadd.f32 %v1244, %v1245
        %v1389 = vadd.f32 %v1388, %v1246
        %v1390 = vadd.f32 %v1389, %v1247
        %1391 = vadd.xlane.f32.xlu0 %v1390
        %v1392 = vpop.xlane.xlu0 %1391
        %v1393 = vadd.f32 %v1248, %v1249
        %v1394 = vadd.f32 %v1393, %v1250
        %v1395 = vadd.f32 %v1394, %v1251
        %1396 = vadd.xlane.f32.xlu0 %v1395
        %v1397 = vpop.xlane.xlu0 %1396
        %v1398 = vadd.f32 %v1252, %v1253
        %v1399 = vadd.f32 %v1398, %v1254
        %v1400 = vadd.f32 %v1399, %v1255
        %1401 = vadd.xlane.f32.xlu0 %v1400
        %v1402 = vpop.xlane.xlu0 %1401
        %v1403 = vadd.f32 %v1256, %v1257
        %v1404 = vadd.f32 %v1403, %v1258
        %v1405 = vadd.f32 %v1404, %v1259
        %1406 = vadd.xlane.f32.xlu0 %v1405
        %v1407 = vpop.xlane.xlu0 %1406
        %v1408 = vadd.f32 %v1260, %v1261
        %v1409 = vadd.f32 %v1408, %v1262
        %v1410 = vadd.f32 %v1409, %v1263
        %1411 = vadd.xlane.f32.xlu0 %v1410
        %v1412 = vpop.xlane.xlu0 %1411
        %v1413 = vadd.f32 %v1264, %v1265
        %v1414 = vadd.f32 %v1413, %v1266
        %v1415 = vadd.f32 %v1414, %v1267
        %1416 = vadd.xlane.f32.xlu0 %v1415
        %v1417 = vpop.xlane.xlu0 %1416
        %v1418 = vadd.f32 %v1268, %v1269
        %v1419 = vadd.f32 %v1418, %v1270
        %v1420 = vadd.f32 %v1419, %v1271
        %1421 = vadd.xlane.f32.xlu0 %v1420
        %v1422 = vpop.xlane.xlu0 %1421
        %v1423 = vadd.f32 %v1272, %v1273
        %v1424 = vadd.f32 %v1423, %v1274
        %v1425 = vadd.f32 %v1424, %v1275
        %1426 = vadd.xlane.f32.xlu0 %v1425
        %v1427 = vpop.xlane.xlu0 %1426
        %v1428 = vadd.f32 %v1276, %v1277
        %v1429 = vadd.f32 %v1428, %v1278
        %v1430 = vadd.f32 %v1429, %v1279
        %1431 = vadd.xlane.f32.xlu0 %v1430
        %v1432 = vpop.xlane.xlu0 %1431
        %v1433 = vadd.f32 %v1280, %v1281
        %v1434 = vadd.f32 %v1433, %v1282
        %v1435 = vadd.f32 %v1434, %v1283
        %1436 = vadd.xlane.f32.xlu0 %v1435
        %v1437 = vpop.xlane.xlu0 %1436
        %v1438 = vadd.f32 %v1284, %v1285
        %v1439 = vadd.f32 %v1438, %v1286
        %v1440 = vadd.f32 %v1439, %v1287
        %1441 = vadd.xlane.f32.xlu0 %v1440
        %v1442 = vpop.xlane.xlu0 %1441
        %v1443 = vadd.f32 %v1288, %v1289
        %v1444 = vadd.f32 %v1443, %v1290
        %v1445 = vadd.f32 %v1444, %v1291
        %1446 = vadd.xlane.f32.xlu0 %v1445
        %v1447 = vpop.xlane.xlu0 %1446
        %v1448 = vadd.f32 %v1292, %v1293
        %v1449 = vadd.f32 %v1448, %v1294
        %v1450 = vadd.f32 %v1449, %v1295
        %1451 = vadd.xlane.f32.xlu0 %v1450
        %v1452 = vpop.xlane.xlu0 %1451
        %v1453 = vadd.f32 %v1296, %v1297
        %v1454 = vadd.f32 %v1453, %v1298
        %v1455 = vadd.f32 %v1454, %v1299
        %1456 = vadd.xlane.f32.xlu0 %v1455
        %v1457 = vpop.xlane.xlu0 %1456
        %v1458 = vadd.f32 %v1300, %v1301
        %v1459 = vadd.f32 %v1458, %v1302
        %v1460 = vadd.f32 %v1459, %v1303
        %1461 = vadd.xlane.f32.xlu0 %v1460
        %v1462 = vpop.xlane.xlu0 %1461
        %v1463 = vadd.f32 %v1304, %v1305
        %v1464 = vadd.f32 %v1463, %v1306
        %v1465 = vadd.f32 %v1464, %v1307
        %1466 = vadd.xlane.f32.xlu0 %v1465
        %v1467 = vpop.xlane.xlu0 %1466
        %v1468 = vmax.f32 %v1312, 1.0
        %v1469 = vmax.f32 %v1317, 1.0
        %v1470 = vmax.f32 %v1322, 1.0
        %v1471 = vmax.f32 %v1327, 1.0
        %v1472 = vmax.f32 %v1332, 1.0
        %v1473 = vmax.f32 %v1337, 1.0
        %v1474 = vmax.f32 %v1342, 1.0
        %v1475 = vmax.f32 %v1347, 1.0
        %v1476 = vmax.f32 %v1352, 1.0
        %v1477 = vmax.f32 %v1357, 1.0
        %v1478 = vmax.f32 %v1362, 1.0
        %v1479 = vmax.f32 %v1367, 1.0
        %v1480 = vmax.f32 %v1372, 1.0
        %v1481 = vmax.f32 %v1377, 1.0
        %v1482 = vmax.f32 %v1382, 1.0
        %v1483 = vmax.f32 %v1387, 1.0
        %v1484 = vmax.f32 %v1392, 1.0
        %v1485 = vmax.f32 %v1397, 1.0
        %v1486 = vmax.f32 %v1402, 1.0
        %v1487 = vmax.f32 %v1407, 1.0
        %v1488 = vmax.f32 %v1412, 1.0
        %v1489 = vmax.f32 %v1417, 1.0
        %v1490 = vmax.f32 %v1422, 1.0
        %v1491 = vmax.f32 %v1427, 1.0
        %v1492 = vmax.f32 %v1432, 1.0
        %v1493 = vmax.f32 %v1437, 1.0
        %v1494 = vmax.f32 %v1442, 1.0
        %v1495 = vmax.f32 %v1447, 1.0
        %v1496 = vmax.f32 %v1452, 1.0
        %v1497 = vmax.f32 %v1457, 1.0
        %v1498 = vmax.f32 %v1462, 1.0
        %v1499 = vmax.f32 %v1467, 1.0
        %v1500 = vrcp.pop %v1468
        %v1501 = vmul.f32 %v1468, %v1500
        %v1502 = vsub.f32 1.0, %v1501
        %v1503 = vmul.f32 %v1500, %v1502
        %v1504 = vadd.f32 %v1500, %v1503
        %vm1505 = vweird.f32 %v1468
        %vm1506 = vweird.f32 %v1500
        %vm1507 = vmor %vm1505, %vm1506
        %v1508 = vsel %vm1507, %v1500, %v1504
        %v1509 = vand.u32 2147483647, %v1468
        %vm1510 = vcmp.eq.f32.partialorder %v1509, 8.507059e+37
        %v1511 = vand.u32 %v1468, 2147483648
        %v1512 = vor.u32 1.1754944e-38, %v1511
        %v1513 = vsel %vm1510, %v1512, %v1508
        %v1514 = vrcp.pop %v1469
        %v1515 = vmul.f32 %v1469, %v1514
        %v1516 = vsub.f32 1.0, %v1515
        %v1517 = vmul.f32 %v1514, %v1516
        %v1518 = vadd.f32 %v1514, %v1517
        %vm1519 = vweird.f32 %v1469
        %vm1520 = vweird.f32 %v1514
        %vm1521 = vmor %vm1519, %vm1520
        %v1522 = vsel %vm1521, %v1514, %v1518
        %v1523 = vand.u32 2147483647, %v1469
        %vm1524 = vcmp.eq.f32.partialorder %v1523, 8.507059e+37
        %v1525 = vand.u32 %v1469, 2147483648
        %v1526 = vor.u32 1.1754944e-38, %v1525
        %v1527 = vsel %vm1524, %v1526, %v1522
        %v1528 = vrcp.pop %v1470
        %v1529 = vmul.f32 %v1470, %v1528
        %v1530 = vsub.f32 1.0, %v1529
        %v1531 = vmul.f32 %v1528, %v1530
        %v1532 = vadd.f32 %v1528, %v1531
        %vm1533 = vweird.f32 %v1470
        %vm1534 = vweird.f32 %v1528
        %vm1535 = vmor %vm1533, %vm1534
        %v1536 = vsel %vm1535, %v1528, %v1532
        %v1537 = vand.u32 2147483647, %v1470
        %vm1538 = vcmp.eq.f32.partialorder %v1537, 8.507059e+37
        %v1539 = vand.u32 %v1470, 2147483648
        %v1540 = vor.u32 1.1754944e-38, %v1539
        %v1541 = vsel %vm1538, %v1540, %v1536
        %v1542 = vrcp.pop %v1471
        %v1543 = vmul.f32 %v1471, %v1542
        %v1544 = vsub.f32 1.0, %v1543
        %v1545 = vmul.f32 %v1542, %v1544
        %v1546 = vadd.f32 %v1542, %v1545
        %vm1547 = vweird.f32 %v1471
        %vm1548 = vweird.f32 %v1542
        %vm1549 = vmor %vm1547, %vm1548
        %v1550 = vsel %vm1549, %v1542, %v1546
        %v1551 = vand.u32 2147483647, %v1471
        %vm1552 = vcmp.eq.f32.partialorder %v1551, 8.507059e+37
        %v1553 = vand.u32 %v1471, 2147483648
        %v1554 = vor.u32 1.1754944e-38, %v1553
        %v1555 = vsel %vm1552, %v1554, %v1550
        %v1556 = vrcp.pop %v1472
        %v1557 = vmul.f32 %v1472, %v1556
        %v1558 = vsub.f32 1.0, %v1557
        %v1559 = vmul.f32 %v1556, %v1558
        %v1560 = vadd.f32 %v1556, %v1559
        %vm1561 = vweird.f32 %v1472
        %vm1562 = vweird.f32 %v1556
        %vm1563 = vmor %vm1561, %vm1562
        %v1564 = vsel %vm1563, %v1556, %v1560
        %v1565 = vand.u32 2147483647, %v1472
        %vm1566 = vcmp.eq.f32.partialorder %v1565, 8.507059e+37
        %v1567 = vand.u32 %v1472, 2147483648
        %v1568 = vor.u32 1.1754944e-38, %v1567
        %v1569 = vsel %vm1566, %v1568, %v1564
        %v1570 = vrcp.pop %v1473
        %v1571 = vmul.f32 %v1473, %v1570
        %v1572 = vsub.f32 1.0, %v1571
        %v1573 = vmul.f32 %v1570, %v1572
        %v1574 = vadd.f32 %v1570, %v1573
        %vm1575 = vweird.f32 %v1473
        %vm1576 = vweird.f32 %v1570
        %vm1577 = vmor %vm1575, %vm1576
        %v1578 = vsel %vm1577, %v1570, %v1574
        %v1579 = vand.u32 2147483647, %v1473
        %vm1580 = vcmp.eq.f32.partialorder %v1579, 8.507059e+37
        %v1581 = vand.u32 %v1473, 2147483648
        %v1582 = vor.u32 1.1754944e-38, %v1581
        %v1583 = vsel %vm1580, %v1582, %v1578
        %v1584 = vrcp.pop %v1474
        %v1585 = vmul.f32 %v1474, %v1584
        %v1586 = vsub.f32 1.0, %v1585
        %v1587 = vmul.f32 %v1584, %v1586
        %v1588 = vadd.f32 %v1584, %v1587
        %vm1589 = vweird.f32 %v1474
        %vm1590 = vweird.f32 %v1584
        %vm1591 = vmor %vm1589, %vm1590
        %v1592 = vsel %vm1591, %v1584, %v1588
        %v1593 = vand.u32 2147483647, %v1474
        %vm1594 = vcmp.eq.f32.partialorder %v1593, 8.507059e+37
        %v1595 = vand.u32 %v1474, 2147483648
        %v1596 = vor.u32 1.1754944e-38, %v1595
        %v1597 = vsel %vm1594, %v1596, %v1592
        %v1598 = vrcp.pop %v1475
        %v1599 = vmul.f32 %v1475, %v1598
        %v1600 = vsub.f32 1.0, %v1599
        %v1601 = vmul.f32 %v1598, %v1600
        %v1602 = vadd.f32 %v1598, %v1601
        %vm1603 = vweird.f32 %v1475
        %vm1604 = vweird.f32 %v1598
        %vm1605 = vmor %vm1603, %vm1604
        %v1606 = vsel %vm1605, %v1598, %v1602
        %v1607 = vand.u32 2147483647, %v1475
        %vm1608 = vcmp.eq.f32.partialorder %v1607, 8.507059e+37
        %v1609 = vand.u32 %v1475, 2147483648
        %v1610 = vor.u32 1.1754944e-38, %v1609
        %v1611 = vsel %vm1608, %v1610, %v1606
        %v1612 = vrcp.pop %v1476
        %v1613 = vmul.f32 %v1476, %v1612
        %v1614 = vsub.f32 1.0, %v1613
        %v1615 = vmul.f32 %v1612, %v1614
        %v1616 = vadd.f32 %v1612, %v1615
        %vm1617 = vweird.f32 %v1476
        %vm1618 = vweird.f32 %v1612
        %vm1619 = vmor %vm1617, %vm1618
        %v1620 = vsel %vm1619, %v1612, %v1616
        %v1621 = vand.u32 2147483647, %v1476
        %vm1622 = vcmp.eq.f32.partialorder %v1621, 8.507059e+37
        %v1623 = vand.u32 %v1476, 2147483648
        %v1624 = vor.u32 1.1754944e-38, %v1623
        %v1625 = vsel %vm1622, %v1624, %v1620
        %v1626 = vrcp.pop %v1477
        %v1627 = vmul.f32 %v1477, %v1626
        %v1628 = vsub.f32 1.0, %v1627
        %v1629 = vmul.f32 %v1626, %v1628
        %v1630 = vadd.f32 %v1626, %v1629
        %vm1631 = vweird.f32 %v1477
        %vm1632 = vweird.f32 %v1626
        %vm1633 = vmor %vm1631, %vm1632
        %v1634 = vsel %vm1633, %v1626, %v1630
        %v1635 = vand.u32 2147483647, %v1477
        %vm1636 = vcmp.eq.f32.partialorder %v1635, 8.507059e+37
        %v1637 = vand.u32 %v1477, 2147483648
        %v1638 = vor.u32 1.1754944e-38, %v1637
        %v1639 = vsel %vm1636, %v1638, %v1634
        %v1640 = vrcp.pop %v1478
        %v1641 = vmul.f32 %v1478, %v1640
        %v1642 = vsub.f32 1.0, %v1641
        %v1643 = vmul.f32 %v1640, %v1642
        %v1644 = vadd.f32 %v1640, %v1643
        %vm1645 = vweird.f32 %v1478
        %vm1646 = vweird.f32 %v1640
        %vm1647 = vmor %vm1645, %vm1646
        %v1648 = vsel %vm1647, %v1640, %v1644
        %v1649 = vand.u32 2147483647, %v1478
        %vm1650 = vcmp.eq.f32.partialorder %v1649, 8.507059e+37
        %v1651 = vand.u32 %v1478, 2147483648
        %v1652 = vor.u32 1.1754944e-38, %v1651
        %v1653 = vsel %vm1650, %v1652, %v1648
        %v1654 = vrcp.pop %v1479
        %v1655 = vmul.f32 %v1479, %v1654
        %v1656 = vsub.f32 1.0, %v1655
        %v1657 = vmul.f32 %v1654, %v1656
        %v1658 = vadd.f32 %v1654, %v1657
        %vm1659 = vweird.f32 %v1479
        %vm1660 = vweird.f32 %v1654
        %vm1661 = vmor %vm1659, %vm1660
        %v1662 = vsel %vm1661, %v1654, %v1658
        %v1663 = vand.u32 2147483647, %v1479
        %vm1664 = vcmp.eq.f32.partialorder %v1663, 8.507059e+37
        %v1665 = vand.u32 %v1479, 2147483648
        %v1666 = vor.u32 1.1754944e-38, %v1665
        %v1667 = vsel %vm1664, %v1666, %v1662
        %v1668 = vrcp.pop %v1480
        %v1669 = vmul.f32 %v1480, %v1668
        %v1670 = vsub.f32 1.0, %v1669
        %v1671 = vmul.f32 %v1668, %v1670
        %v1672 = vadd.f32 %v1668, %v1671
        %vm1673 = vweird.f32 %v1480
        %vm1674 = vweird.f32 %v1668
        %vm1675 = vmor %vm1673, %vm1674
        %v1676 = vsel %vm1675, %v1668, %v1672
        %v1677 = vand.u32 2147483647, %v1480
        %vm1678 = vcmp.eq.f32.partialorder %v1677, 8.507059e+37
        %v1679 = vand.u32 %v1480, 2147483648
        %v1680 = vor.u32 1.1754944e-38, %v1679
        %v1681 = vsel %vm1678, %v1680, %v1676
        %v1682 = vrcp.pop %v1481
        %v1683 = vmul.f32 %v1481, %v1682
        %v1684 = vsub.f32 1.0, %v1683
        %v1685 = vmul.f32 %v1682, %v1684
        %v1686 = vadd.f32 %v1682, %v1685
        %vm1687 = vweird.f32 %v1481
        %vm1688 = vweird.f32 %v1682
        %vm1689 = vmor %vm1687, %vm1688
        %v1690 = vsel %vm1689, %v1682, %v1686
        %v1691 = vand.u32 2147483647, %v1481
        %vm1692 = vcmp.eq.f32.partialorder %v1691, 8.507059e+37
        %v1693 = vand.u32 %v1481, 2147483648
        %v1694 = vor.u32 1.1754944e-38, %v1693
        %v1695 = vsel %vm1692, %v1694, %v1690
        %v1696 = vrcp.pop %v1482
        %v1697 = vmul.f32 %v1482, %v1696
        %v1698 = vsub.f32 1.0, %v1697
        %v1699 = vmul.f32 %v1696, %v1698
        %v1700 = vadd.f32 %v1696, %v1699
        %vm1701 = vweird.f32 %v1482
        %vm1702 = vweird.f32 %v1696
        %vm1703 = vmor %vm1701, %vm1702
        %v1704 = vsel %vm1703, %v1696, %v1700
        %v1705 = vand.u32 2147483647, %v1482
        %vm1706 = vcmp.eq.f32.partialorder %v1705, 8.507059e+37
        %v1707 = vand.u32 %v1482, 2147483648
        %v1708 = vor.u32 1.1754944e-38, %v1707
        %v1709 = vsel %vm1706, %v1708, %v1704
        %v1710 = vrcp.pop %v1483
        %v1711 = vmul.f32 %v1483, %v1710
        %v1712 = vsub.f32 1.0, %v1711
        %v1713 = vmul.f32 %v1710, %v1712
        %v1714 = vadd.f32 %v1710, %v1713
        %vm1715 = vweird.f32 %v1483
        %vm1716 = vweird.f32 %v1710
        %vm1717 = vmor %vm1715, %vm1716
        %v1718 = vsel %vm1717, %v1710, %v1714
        %v1719 = vand.u32 2147483647, %v1483
        %vm1720 = vcmp.eq.f32.partialorder %v1719, 8.507059e+37
        %v1721 = vand.u32 %v1483, 2147483648
        %v1722 = vor.u32 1.1754944e-38, %v1721
        %v1723 = vsel %vm1720, %v1722, %v1718
        %v1724 = vrcp.pop %v1484
        %v1725 = vmul.f32 %v1484, %v1724
        %v1726 = vsub.f32 1.0, %v1725
        %v1727 = vmul.f32 %v1724, %v1726
        %v1728 = vadd.f32 %v1724, %v1727
        %vm1729 = vweird.f32 %v1484
        %vm1730 = vweird.f32 %v1724
        %vm1731 = vmor %vm1729, %vm1730
        %v1732 = vsel %vm1731, %v1724, %v1728
        %v1733 = vand.u32 2147483647, %v1484
        %vm1734 = vcmp.eq.f32.partialorder %v1733, 8.507059e+37
        %v1735 = vand.u32 %v1484, 2147483648
        %v1736 = vor.u32 1.1754944e-38, %v1735
        %v1737 = vsel %vm1734, %v1736, %v1732
        %v1738 = vrcp.pop %v1485
        %v1739 = vmul.f32 %v1485, %v1738
        %v1740 = vsub.f32 1.0, %v1739
        %v1741 = vmul.f32 %v1738, %v1740
        %v1742 = vadd.f32 %v1738, %v1741
        %vm1743 = vweird.f32 %v1485
        %vm1744 = vweird.f32 %v1738
        %vm1745 = vmor %vm1743, %vm1744
        %v1746 = vsel %vm1745, %v1738, %v1742
        %v1747 = vand.u32 2147483647, %v1485
        %vm1748 = vcmp.eq.f32.partialorder %v1747, 8.507059e+37
        %v1749 = vand.u32 %v1485, 2147483648
        %v1750 = vor.u32 1.1754944e-38, %v1749
        %v1751 = vsel %vm1748, %v1750, %v1746
        %v1752 = vrcp.pop %v1486
        %v1753 = vmul.f32 %v1486, %v1752
        %v1754 = vsub.f32 1.0, %v1753
        %v1755 = vmul.f32 %v1752, %v1754
        %v1756 = vadd.f32 %v1752, %v1755
        %vm1757 = vweird.f32 %v1486
        %vm1758 = vweird.f32 %v1752
        %vm1759 = vmor %vm1757, %vm1758
        %v1760 = vsel %vm1759, %v1752, %v1756
        %v1761 = vand.u32 2147483647, %v1486
        %vm1762 = vcmp.eq.f32.partialorder %v1761, 8.507059e+37
        %v1763 = vand.u32 %v1486, 2147483648
        %v1764 = vor.u32 1.1754944e-38, %v1763
        %v1765 = vsel %vm1762, %v1764, %v1760
        %v1766 = vrcp.pop %v1487
        %v1767 = vmul.f32 %v1487, %v1766
        %v1768 = vsub.f32 1.0, %v1767
        %v1769 = vmul.f32 %v1766, %v1768
        %v1770 = vadd.f32 %v1766, %v1769
        %vm1771 = vweird.f32 %v1487
        %vm1772 = vweird.f32 %v1766
        %vm1773 = vmor %vm1771, %vm1772
        %v1774 = vsel %vm1773, %v1766, %v1770
        %v1775 = vand.u32 2147483647, %v1487
        %vm1776 = vcmp.eq.f32.partialorder %v1775, 8.507059e+37
        %v1777 = vand.u32 %v1487, 2147483648
        %v1778 = vor.u32 1.1754944e-38, %v1777
        %v1779 = vsel %vm1776, %v1778, %v1774
        %v1780 = vrcp.pop %v1488
        %v1781 = vmul.f32 %v1488, %v1780
        %v1782 = vsub.f32 1.0, %v1781
        %v1783 = vmul.f32 %v1780, %v1782
        %v1784 = vadd.f32 %v1780, %v1783
        %vm1785 = vweird.f32 %v1488
        %vm1786 = vweird.f32 %v1780
        %vm1787 = vmor %vm1785, %vm1786
        %v1788 = vsel %vm1787, %v1780, %v1784
        %v1789 = vand.u32 2147483647, %v1488
        %vm1790 = vcmp.eq.f32.partialorder %v1789, 8.507059e+37
        %v1791 = vand.u32 %v1488, 2147483648
        %v1792 = vor.u32 1.1754944e-38, %v1791
        %v1793 = vsel %vm1790, %v1792, %v1788
        %v1794 = vrcp.pop %v1489
        %v1795 = vmul.f32 %v1489, %v1794
        %v1796 = vsub.f32 1.0, %v1795
        %v1797 = vmul.f32 %v1794, %v1796
        %v1798 = vadd.f32 %v1794, %v1797
        %vm1799 = vweird.f32 %v1489
        %vm1800 = vweird.f32 %v1794
        %vm1801 = vmor %vm1799, %vm1800
        %v1802 = vsel %vm1801, %v1794, %v1798
        %v1803 = vand.u32 2147483647, %v1489
        %vm1804 = vcmp.eq.f32.partialorder %v1803, 8.507059e+37
        %v1805 = vand.u32 %v1489, 2147483648
        %v1806 = vor.u32 1.1754944e-38, %v1805
        %v1807 = vsel %vm1804, %v1806, %v1802
        %v1808 = vrcp.pop %v1490
        %v1809 = vmul.f32 %v1490, %v1808
        %v1810 = vsub.f32 1.0, %v1809
        %v1811 = vmul.f32 %v1808, %v1810
        %v1812 = vadd.f32 %v1808, %v1811
        %vm1813 = vweird.f32 %v1490
        %vm1814 = vweird.f32 %v1808
        %vm1815 = vmor %vm1813, %vm1814
        %v1816 = vsel %vm1815, %v1808, %v1812
        %v1817 = vand.u32 2147483647, %v1490
        %vm1818 = vcmp.eq.f32.partialorder %v1817, 8.507059e+37
        %v1819 = vand.u32 %v1490, 2147483648
        %v1820 = vor.u32 1.1754944e-38, %v1819
        %v1821 = vsel %vm1818, %v1820, %v1816
        %v1822 = vrcp.pop %v1491
        %v1823 = vmul.f32 %v1491, %v1822
        %v1824 = vsub.f32 1.0, %v1823
        %v1825 = vmul.f32 %v1822, %v1824
        %v1826 = vadd.f32 %v1822, %v1825
        %vm1827 = vweird.f32 %v1491
        %vm1828 = vweird.f32 %v1822
        %vm1829 = vmor %vm1827, %vm1828
        %v1830 = vsel %vm1829, %v1822, %v1826
        %v1831 = vand.u32 2147483647, %v1491
        %vm1832 = vcmp.eq.f32.partialorder %v1831, 8.507059e+37
        %v1833 = vand.u32 %v1491, 2147483648
        %v1834 = vor.u32 1.1754944e-38, %v1833
        %v1835 = vsel %vm1832, %v1834, %v1830
        %v1836 = vrcp.pop %v1492
        %v1837 = vmul.f32 %v1492, %v1836
        %v1838 = vsub.f32 1.0, %v1837
        %v1839 = vmul.f32 %v1836, %v1838
        %v1840 = vadd.f32 %v1836, %v1839
        %vm1841 = vweird.f32 %v1492
        %vm1842 = vweird.f32 %v1836
        %vm1843 = vmor %vm1841, %vm1842
        %v1844 = vsel %vm1843, %v1836, %v1840
        %v1845 = vand.u32 2147483647, %v1492
        %vm1846 = vcmp.eq.f32.partialorder %v1845, 8.507059e+37
        %v1847 = vand.u32 %v1492, 2147483648
        %v1848 = vor.u32 1.1754944e-38, %v1847
        %v1849 = vsel %vm1846, %v1848, %v1844
        %v1850 = vrcp.pop %v1493
        %v1851 = vmul.f32 %v1493, %v1850
        %v1852 = vsub.f32 1.0, %v1851
        %v1853 = vmul.f32 %v1850, %v1852
        %v1854 = vadd.f32 %v1850, %v1853
        %vm1855 = vweird.f32 %v1493
        %vm1856 = vweird.f32 %v1850
        %vm1857 = vmor %vm1855, %vm1856
        %v1858 = vsel %vm1857, %v1850, %v1854
        %v1859 = vand.u32 2147483647, %v1493
        %vm1860 = vcmp.eq.f32.partialorder %v1859, 8.507059e+37
        %v1861 = vand.u32 %v1493, 2147483648
        %v1862 = vor.u32 1.1754944e-38, %v1861
        %v1863 = vsel %vm1860, %v1862, %v1858
        %v1864 = vrcp.pop %v1494
        %v1865 = vmul.f32 %v1494, %v1864
        %v1866 = vsub.f32 1.0, %v1865
        %v1867 = vmul.f32 %v1864, %v1866
        %v1868 = vadd.f32 %v1864, %v1867
        %vm1869 = vweird.f32 %v1494
        %vm1870 = vweird.f32 %v1864
        %vm1871 = vmor %vm1869, %vm1870
        %v1872 = vsel %vm1871, %v1864, %v1868
        %v1873 = vand.u32 2147483647, %v1494
        %vm1874 = vcmp.eq.f32.partialorder %v1873, 8.507059e+37
        %v1875 = vand.u32 %v1494, 2147483648
        %v1876 = vor.u32 1.1754944e-38, %v1875
        %v1877 = vsel %vm1874, %v1876, %v1872
        %v1878 = vrcp.pop %v1495
        %v1879 = vmul.f32 %v1495, %v1878
        %v1880 = vsub.f32 1.0, %v1879
        %v1881 = vmul.f32 %v1878, %v1880
        %v1882 = vadd.f32 %v1878, %v1881
        %vm1883 = vweird.f32 %v1495
        %vm1884 = vweird.f32 %v1878
        %vm1885 = vmor %vm1883, %vm1884
        %v1886 = vsel %vm1885, %v1878, %v1882
        %v1887 = vand.u32 2147483647, %v1495
        %vm1888 = vcmp.eq.f32.partialorder %v1887, 8.507059e+37
        %v1889 = vand.u32 %v1495, 2147483648
        %v1890 = vor.u32 1.1754944e-38, %v1889
        %v1891 = vsel %vm1888, %v1890, %v1886
        %v1892 = vrcp.pop %v1496
        %v1893 = vmul.f32 %v1496, %v1892
        %v1894 = vsub.f32 1.0, %v1893
        %v1895 = vmul.f32 %v1892, %v1894
        %v1896 = vadd.f32 %v1892, %v1895
        %vm1897 = vweird.f32 %v1496
        %vm1898 = vweird.f32 %v1892
        %vm1899 = vmor %vm1897, %vm1898
        %v1900 = vsel %vm1899, %v1892, %v1896
        %v1901 = vand.u32 2147483647, %v1496
        %vm1902 = vcmp.eq.f32.partialorder %v1901, 8.507059e+37
        %v1903 = vand.u32 %v1496, 2147483648
        %v1904 = vor.u32 1.1754944e-38, %v1903
        %v1905 = vsel %vm1902, %v1904, %v1900
        %v1906 = vrcp.pop %v1497
        %v1907 = vmul.f32 %v1497, %v1906
        %v1908 = vsub.f32 1.0, %v1907
        %v1909 = vmul.f32 %v1906, %v1908
        %v1910 = vadd.f32 %v1906, %v1909
        %vm1911 = vweird.f32 %v1497
        %vm1912 = vweird.f32 %v1906
        %vm1913 = vmor %vm1911, %vm1912
        %v1914 = vsel %vm1913, %v1906, %v1910
        %v1915 = vand.u32 2147483647, %v1497
        %vm1916 = vcmp.eq.f32.partialorder %v1915, 8.507059e+37
        %v1917 = vand.u32 %v1497, 2147483648
        %v1918 = vor.u32 1.1754944e-38, %v1917
        %v1919 = vsel %vm1916, %v1918, %v1914
        %v1920 = vrcp.pop %v1498
        %v1921 = vmul.f32 %v1498, %v1920
        %v1922 = vsub.f32 1.0, %v1921
        %v1923 = vmul.f32 %v1920, %v1922
        %v1924 = vadd.f32 %v1920, %v1923
        %vm1925 = vweird.f32 %v1498
        %vm1926 = vweird.f32 %v1920
        %vm1927 = vmor %vm1925, %vm1926
        %v1928 = vsel %vm1927, %v1920, %v1924
        %v1929 = vand.u32 2147483647, %v1498
        %vm1930 = vcmp.eq.f32.partialorder %v1929, 8.507059e+37
        %v1931 = vand.u32 %v1498, 2147483648
        %v1932 = vor.u32 1.1754944e-38, %v1931
        %v1933 = vsel %vm1930, %v1932, %v1928
        %v1934 = vrcp.pop %v1499
        %v1935 = vmul.f32 %v1499, %v1934
        %v1936 = vsub.f32 1.0, %v1935
        %v1937 = vmul.f32 %v1934, %v1936
        %v1938 = vadd.f32 %v1934, %v1937
        %vm1939 = vweird.f32 %v1499
        %vm1940 = vweird.f32 %v1934
        %vm1941 = vmor %vm1939, %vm1940
        %v1942 = vsel %vm1941, %v1934, %v1938
        %v1943 = vand.u32 2147483647, %v1499
        %vm1944 = vcmp.eq.f32.partialorder %v1943, 8.507059e+37
        %v1945 = vand.u32 %v1499, 2147483648
        %v1946 = vor.u32 1.1754944e-38, %v1945
        %v1947 = vsel %vm1944, %v1946, %v1942
        %v1948 = vld [vmem:[%s213] sm:$0xff]
        %v1949 = vld [vmem:[%s213 + $0x8] sm:$0xff]
        %v1950 = vld [vmem:[%s213 + $0x10] sm:$0xff]
        %v1951 = vld [vmem:[%s213 + $0x18] sm:$0xff]
        %v1952 = vld [vmem:[%s213 + $0x20] sm:$0xff]
        %v1953 = vld [vmem:[%s213 + $0x28] sm:$0xff]
        %v1954 = vld [vmem:[%s213 + $0x30] sm:$0xff]
        %v1955 = vld [vmem:[%s213 + $0x38] sm:$0xff]
        %v1956 = vld [vmem:[%s213 + $0x40] sm:$0xff]
        %v1957 = vld [vmem:[%s213 + $0x48] sm:$0xff]
        %v1958 = vld [vmem:[%s213 + $0x50] sm:$0xff]
        %v1959 = vld [vmem:[%s213 + $0x58] sm:$0xff]
        %v1960 = vld [vmem:[%s213 + $0x60] sm:$0xff]
        %v1961 = vld [vmem:[%s213 + $0x68] sm:$0xff]
        %v1962 = vld [vmem:[%s213 + $0x70] sm:$0xff]
        %v1963 = vld [vmem:[%s213 + $0x78] sm:$0xff]
        %v1964 = vld [vmem:[%s213 + $0x80] sm:$0xff]
        %v1965 = vld [vmem:[%s213 + $0x88] sm:$0xff]
        %v1966 = vld [vmem:[%s213 + $0x90] sm:$0xff]
        %v1967 = vld [vmem:[%s213 + $0x98] sm:$0xff]
        %v1968 = vld [vmem:[%s213 + $0xa0] sm:$0xff]
        %v1969 = vld [vmem:[%s213 + $0xa8] sm:$0xff]
        %v1970 = vld [vmem:[%s213 + $0xb0] sm:$0xff]
        %v1971 = vld [vmem:[%s213 + $0xb8] sm:$0xff]
        %v1972 = vld [vmem:[%s213 + $0xc0] sm:$0xff]
        %v1973 = vld [vmem:[%s213 + $0xc8] sm:$0xff]
        %v1974 = vld [vmem:[%s213 + $0xd0] sm:$0xff]
        %v1975 = vld [vmem:[%s213 + $0xd8] sm:$0xff]
        %v1976 = vld [vmem:[%s213 + $0xe0] sm:$0xff]
        %v1977 = vld [vmem:[%s213 + $0xe8] sm:$0xff]
        %v1978 = vld [vmem:[%s213 + $0xf0] sm:$0xff]
        %v1979 = vld [vmem:[%s213 + $0xf8] sm:$0xff]
        %v1980 = vmul.f32 %v1101, %v1513
        %v1981 = vmul.f32 %v1103, %v1527
        %v1982 = vmul.f32 %v1106, %v1541
        %v1983 = vmul.f32 %v1108, %v1555
        %v1984 = vmul.f32 %v1111, %v1569
        %v1985 = vmul.f32 %v1113, %v1583
        %v1986 = vmul.f32 %v1116, %v1597
        %v1987 = vmul.f32 %v1118, %v1611
        %v1988 = vmul.f32 %v1121, %v1625
        %v1989 = vmul.f32 %v1123, %v1639
        %v1990 = vmul.f32 %v1126, %v1653
        %v1991 = vmul.f32 %v1128, %v1667
        %v1992 = vmul.f32 %v1131, %v1681
        %v1993 = vmul.f32 %v1133, %v1695
        %v1994 = vmul.f32 %v1136, %v1709
        %v1995 = vmul.f32 %v1138, %v1723
        %v1996 = vmul.f32 %v1141, %v1737
        %v1997 = vmul.f32 %v1143, %v1751
        %v1998 = vmul.f32 %v1146, %v1765
        %v1999 = vmul.f32 %v1148, %v1779
        %v2000 = vmul.f32 %v1151, %v1793
        %v2001 = vmul.f32 %v1153, %v1807
        %v2002 = vmul.f32 %v1156, %v1821
        %v2003 = vmul.f32 %v1158, %v1835
        %v2004 = vmul.f32 %v1161, %v1849
        %v2005 = vmul.f32 %v1163, %v1863
        %v2006 = vmul.f32 %v1166, %v1877
        %v2007 = vmul.f32 %v1168, %v1891
        %v2008 = vmul.f32 %v1171, %v1905
        %v2009 = vmul.f32 %v1173, %v1919
        %v2010 = vmul.f32 %v1176, %v1933
        %v2011 = vmul.f32 %v1178, %v1947
        %v2012 = vadd.f32 %v1948, %v1980
        %v2013 = vadd.f32 %v1949, %v1981
        %v2014 = vadd.f32 %v1950, %v1982
        %v2015 = vadd.f32 %v1951, %v1983
        %v2016 = vadd.f32 %v1952, %v1984
        %v2017 = vadd.f32 %v1953, %v1985
        %v2018 = vadd.f32 %v1954, %v1986
        %v2019 = vadd.f32 %v1955, %v1987
        %v2020 = vadd.f32 %v1956, %v1988
        %v2021 = vadd.f32 %v1957, %v1989
        %v2022 = vadd.f32 %v1958, %v1990
        %v2023 = vadd.f32 %v1959, %v1991
        %v2024 = vadd.f32 %v1960, %v1992
        %v2025 = vadd.f32 %v1961, %v1993
        %v2026 = vadd.f32 %v1962, %v1994
        %v2027 = vadd.f32 %v1963, %v1995
        %v2028 = vadd.f32 %v1964, %v1996
        %v2029 = vadd.f32 %v1965, %v1997
        %v2030 = vadd.f32 %v1966, %v1998
        %v2031 = vadd.f32 %v1967, %v1999
        %v2032 = vadd.f32 %v1968, %v2000
        %v2033 = vadd.f32 %v1969, %v2001
        %v2034 = vadd.f32 %v1970, %v2002
        %v2035 = vadd.f32 %v1971, %v2003
        %v2036 = vadd.f32 %v1972, %v2004
        %v2037 = vadd.f32 %v1973, %v2005
        %v2038 = vadd.f32 %v1974, %v2006
        %v2039 = vadd.f32 %v1975, %v2007
        %v2040 = vadd.f32 %v1976, %v2008
        %v2041 = vadd.f32 %v1977, %v2009
        %v2042 = vadd.f32 %v1978, %v2010
        %v2043 = vadd.f32 %v1979, %v2011
        %2044 = vst [vmem:[%s207] sm:$0xff] %v2012
        %2045 = vst [vmem:[%s207 + $0x8] sm:$0xff] %v2013
        %2046 = vst [vmem:[%s207 + $0x10] sm:$0xff] %v2014
        %2047 = vst [vmem:[%s207 + $0x18] sm:$0xff] %v2015
        %2048 = vst [vmem:[%s207 + $0x20] sm:$0xff] %v2016
        %2049 = vst [vmem:[%s207 + $0x28] sm:$0xff] %v2017
        %2050 = vst [vmem:[%s207 + $0x30] sm:$0xff] %v2018
        %2051 = vst [vmem:[%s207 + $0x38] sm:$0xff] %v2019
        %2052 = vst [vmem:[%s207 + $0x40] sm:$0xff] %v2020
        %2053 = vst [vmem:[%s207 + $0x48] sm:$0xff] %v2021
        %2054 = vst [vmem:[%s207 + $0x50] sm:$0xff] %v2022
        %2055 = vst [vmem:[%s207 + $0x58] sm:$0xff] %v2023
        %2056 = vst [vmem:[%s207 + $0x60] sm:$0xff] %v2024
        %2057 = vst [vmem:[%s207 + $0x68] sm:$0xff] %v2025
        %2058 = vst [vmem:[%s207 + $0x70] sm:$0xff] %v2026
        %2059 = vst [vmem:[%s207 + $0x78] sm:$0xff] %v2027
        %2060 = vst [vmem:[%s207 + $0x80] sm:$0xff] %v2028
        %2061 = vst [vmem:[%s207 + $0x88] sm:$0xff] %v2029
        %2062 = vst [vmem:[%s207 + $0x90] sm:$0xff] %v2030
        %2063 = vst [vmem:[%s207 + $0x98] sm:$0xff] %v2031
        %2064 = vst [vmem:[%s207 + $0xa0] sm:$0xff] %v2032
        %2065 = vst [vmem:[%s207 + $0xa8] sm:$0xff] %v2033
        %2066 = vst [vmem:[%s207 + $0xb0] sm:$0xff] %v2034
        %2067 = vst [vmem:[%s207 + $0xb8] sm:$0xff] %v2035
        %2068 = vst [vmem:[%s207 + $0xc0] sm:$0xff] %v2036
        %2069 = vst [vmem:[%s207 + $0xc8] sm:$0xff] %v2037
        %2070 = vst [vmem:[%s207 + $0xd0] sm:$0xff] %v2038
        %2071 = vst [vmem:[%s207 + $0xd8] sm:$0xff] %v2039
        %2072 = vst [vmem:[%s207 + $0xe0] sm:$0xff] %v2040
        %2073 = vst [vmem:[%s207 + $0xe8] sm:$0xff] %v2041
        %2074 = vst [vmem:[%s207 + $0xf0] sm:$0xff] %v2042
        %2075 = vst [vmem:[%s207 + $0xf8] sm:$0xff] %v2043
        %s2076 = sand.u32 %s101, 1
        %s2077 = scalar_lea.sflag [#allocation4], %s2076
        %s2078 = sand.u32 %s101, 1
        %s2079 = smul.addr %s2078, 256
        %s2080 = scalar_lea.vmem [#allocation5], %s2079
        // Predicated region
        $region37: #{_gnn_pallas.1} parent=31 // pred_check
          %p2081 = pneg %p111
        $region38: #{_gnn_pallas.1} parent=31 // pred_check_branch
          %2083 = sbr.rel (%p2081) target = $region40
        $region39: #{_gnn_pallas.1} parent=31 // pred_region
          %s2084 = smul.u32 32, %s20
          %2086 = vsyncadd %s2077, 0
          %s2087 = smul.addr %s2084, 8
          %s2088 = scalar_lea.hbm %s3, %s2087
          %s2089 = sshll.u32 %s2080, 4
          %s2090 = int_to_ptr.vmem [resolvable:$true] %s2089
          %s2091 = sshll.u32 %s2088, 4
          %s2092 = int_to_ptr.hbm [resolvable:$true] %s2091
          %2097 = dma.vmem_to_hbm [thread:$0]  %s2090, 4096, %s2092, %s2077, 128, 128, 8
        $region40: #{_gnn_pallas.1} parent=31 // pred_fallthru
          _
      $region32: #{_gnn_pallas.1} parent=5 // pred_fallthru
        _
      %p2098 = scmp.le.s32.totalorder 2, %s15
      // Predicated region
      $region41: #{_gnn_pallas.1} parent=5 // pred_check
        %p2099 = pneg %p2098
      $region42: #{_gnn_pallas.1} parent=5 // pred_check_branch
        %2101 = sbr.rel (%p2099) target = $region44
      $region43: #{_gnn_pallas.1} parent=5 // pred_region
        %s2102 = ssub.s32 %s15, 2
        // Predicated region
        $region45: #{_gnn_pallas.1} parent=43 // pred_check
          %p2103 = pneg %p117
        $region46: #{_gnn_pallas.1} parent=43 // pred_check_branch
          %2105 = sbr.rel (%p2103) target = $region48
        $region47: #{_gnn_pallas.1} parent=43 // pred_region
          %s2106 = sand.u32 %s102, 1
          %s2107 = scalar_lea.sflag [#allocation4], %s2106
          %s2108 = sand.u32 %s102, 1
          %s2109 = smul.addr %s2108, 256
          %s2110 = scalar_lea.vmem [#allocation5], %s2109
          %2112 = dma.done %s2107, 4096
        $region48: #{_gnn_pallas.1} parent=43 // pred_fallthru
          _
      $region44: #{_gnn_pallas.1} parent=5 // pred_fallthru
        _
    $region6: #{_gnn_pallas.1} parent=1 // loop_footer
      %s19 = sadd.s32 1, %s15
    $region7: #{_gnn_pallas.1} parent=1 // loop_footer_branch
      %14 = sbr.rel target = $region3
    $region8: #{_gnn_pallas.1} parent=1 // loop_exit
      _
    %2113 = vsyncpa [#allocation3], 1
    %s2114 = scalar_lea.sflag [#allocation3], 1
    %2115 = vsyncpa %s2114, 1
    %2116 = vsyncpa [#allocation4], 1
    %s2117 = scalar_lea.sflag [#allocation4], 1
    %2118 = vsyncpa %s2117, 1

</llo_original>
